<compile_context>
chip_gen: v7x
topology: tpu7x:2x2x1
jax: 0.10.0
libtpu: 0.0.40
codegen_flags: <defaults>
</compile_context>

<pallas_src>
import functools
import math

import jax
import jax.numpy as jnp
from jax.experimental import pallas as pl
from jax.experimental.pallas import tpu as pltpu

D_MODEL = 32
N_HEAD = 2
HEAD_DIM = D_MODEL // N_HEAD
D_FF = 128
LN_EPS = 1e-5
VOCAB_SIZE = 46   # len(vocab) in the reference script
V_PAD = 128       # lane-dense padded vocab width (embedding rows & logit lanes)
NEG_BIG = -1e30   # finite stand-in for -inf in the additive causal mask

# rows of the packed bias/gain slab (each row zero-padded to 128 lanes)
ROW_BQ = 0                    # N_HEAD rows (1/sqrt(head_dim) pre-folded)
ROW_BK = N_HEAD               # N_HEAD rows
ROW_BV = 2 * N_HEAD           # N_HEAD rows
ROW_BO = 3 * N_HEAD
ROW_G1 = 3 * N_HEAD + 1
ROW_BE1 = 3 * N_HEAD + 2
ROW_B1 = 3 * N_HEAD + 3
ROW_B2 = 3 * N_HEAD + 4
ROW_G2 = 3 * N_HEAD + 5
ROW_BE2 = 3 * N_HEAD + 6
ROW_BOUT = 3 * N_HEAD + 7
N_BIAS_ROWS = 3 * N_HEAD + 8


def _encoder_lm_kernel(ids_ref, pos_ref, mask_ref, emb_ref, wqkv_ref, wo_ref,
                       w1_ref, w2_ref, wout_ref, b_ref, out_ref, attn_sc,
                       *, batch, seq_len):
    n = batch * seq_len

    def brow(r, width):
        return b_ref[r:r + 1, :width]          # (1, width) static window load

    # ---- fused embedding lookup: one-hot(ids) @ sqrt(D)-scaled table (MXU) ----
    ids = ids_ref[...]                          # (n, 1) int32
    onehot = (ids == jax.lax.broadcasted_iota(jnp.int32, (n, V_PAD), 1)
              ).astype(jnp.float32)             # (n, 128)
    x = jnp.dot(onehot, emb_ref[...], preferred_element_type=jnp.float32)
    x = x + pos_ref[...]                        # + positional slab, (n, D)

    # ---- per-head Q/K/V projections (separate small matmuls; no lane slicing) ----
    qs, ks, vs = [], [], []
    for h in range(N_HEAD):
        qs.append(jnp.dot(x, wqkv_ref[h], preferred_element_type=jnp.float32)
                  + brow(ROW_BQ + h, HEAD_DIM))
        ks.append(jnp.dot(x, wqkv_ref[N_HEAD + h], preferred_element_type=jnp.float32)
                  + brow(ROW_BK + h, HEAD_DIM))
        vs.append(jnp.dot(x, wqkv_ref[2 * N_HEAD + h], preferred_element_type=jnp.float32)
                  + brow(ROW_BV + h, HEAD_DIM))

    # ---- per-batch causal attention, output projection folded into the loop ----
    # TODO(synk): for large B*S, switch to a KV-tiled (flash-style) inner loop and a
    # "parallel" batch/query-tile grid axis (v7x: 2 TensorCores, 64 MiB VMEM).
    mask = mask_ref[...]                        # (S, S) additive bias, precomputed
    contract_last = (((1,), (1,)), ((), ()))    # Q · K^T without an explicit transpose
    for b in range(batch):
        rs = slice(b * seq_len, (b + 1) * seq_len)
        acc = None
        for h in range(N_HEAD):
            q_b, k_b, v_b = qs[h][rs, :], ks[h][rs, :], vs[h][rs, :]
            s = jax.lax.dot_general(q_b, k_b, contract_last,
                                    preferred_element_type=jnp.float32) + mask
            s = s - jnp.max(s, axis=-1, keepdims=True)
            p = jnp.exp(s)
            p = p / jnp.sum(p, axis=-1, keepdims=True)     # exact reciprocal
            o = jnp.dot(p, v_b, preferred_element_type=jnp.float32)        # (S, hd)
            c = jnp.dot(o, wo_ref[h * HEAD_DIM:(h + 1) * HEAD_DIM, :],
                        preferred_element_type=jnp.float32)                # (S, D)
            acc = c if acc is None else acc + c
        attn_sc[rs, :] = acc
    attn = attn_sc[...] + brow(ROW_BO, D_MODEL)

    # ---- add & layernorm 1 (post-norm) ----
    x1 = x + attn
    mu1 = jnp.mean(x1, axis=-1, keepdims=True)
    var1 = jnp.mean((x1 - mu1) ** 2, axis=-1, keepdims=True)
    x1 = (x1 - mu1) * jax.lax.rsqrt(var1 + LN_EPS) * brow(ROW_G1, D_MODEL) \
         + brow(ROW_BE1, D_MODEL)

    # ---- feed-forward (linear -> relu -> linear) ----
    h1 = jnp.dot(x1, w1_ref[...], preferred_element_type=jnp.float32) + brow(ROW_B1, D_FF)
    h1 = jnp.maximum(h1, jnp.float32(0.0))
    ff = jnp.dot(h1, w2_ref[...], preferred_element_type=jnp.float32) + brow(ROW_B2, D_MODEL)

    # ---- add & layernorm 2 ----
    x2 = x1 + ff
    mu2 = jnp.mean(x2, axis=-1, keepdims=True)
    var2 = jnp.mean((x2 - mu2) ** 2, axis=-1, keepdims=True)
    x2 = (x2 - mu2) * jax.lax.rsqrt(var2 + LN_EPS) * brow(ROW_G2, D_MODEL) \
         + brow(ROW_BE2, D_MODEL)

    # ---- lane-dense (128-wide) vocab head; consumer slices back to vocab_size ----
    out_ref[...] = jnp.dot(x2, wout_ref[...], preferred_element_type=jnp.float32) \
                   + brow(ROW_BOUT, V_PAD)


def init_params(key, vocab_size=VOCAB_SIZE):
    ks = jax.random.split(key, 11)

    def nrm(k, shape, scale=0.02):
        return scale * jax.random.normal(k, shape, dtype=jnp.float32)

    return dict(
        embedding=nrm(ks[0], (vocab_size, D_MODEL), 1.0),
        pos_embedding=nrm(ks[1], (512, D_MODEL), 0.02),     # shape per __init__
        in_proj_w=nrm(ks[2], (3 * D_MODEL, D_MODEL)),       # MHA packed qkv
        in_proj_b=nrm(ks[3], (3 * D_MODEL,)),
        out_proj_w=nrm(ks[4], (D_MODEL, D_MODEL)),
        out_proj_b=nrm(ks[5], (D_MODEL,)),
        ln1_g=jnp.ones((D_MODEL,), jnp.float32),
        ln1_b=jnp.zeros((D_MODEL,), jnp.float32),
        lin1_w=nrm(ks[6], (D_FF, D_MODEL)),
        lin1_b=nrm(ks[7], (D_FF,)),
        lin2_w=nrm(ks[8], (D_MODEL, D_FF)),
        lin2_b=nrm(ks[9], (D_MODEL,)),
        ln2_g=jnp.ones((D_MODEL,), jnp.float32),
        ln2_b=jnp.zeros((D_MODEL,), jnp.float32),
        w_out=nrm(ks[10], (vocab_size, D_MODEL)),
        b_out=jnp.zeros((vocab_size,), jnp.float32),
    )


def prepare_kernel_weights(params):
    """One-time weight prep: per-head splits, transposes, scale folds, padding,
    and packing of all bias/gain vectors into a single (N_BIAS_ROWS, 128) slab."""
    f32 = jnp.float32
    scale = 1.0 / math.sqrt(HEAD_DIM)

    # sqrt(D)-scaled, vocab-padded embedding table for the in-kernel one-hot lookup
    emb = jnp.zeros((V_PAD, D_MODEL), f32).at[:VOCAB_SIZE, :].set(
        params["embedding"].astype(f32) * math.sqrt(D_MODEL))

    # per-head Q/K/V weights packed along the leading axis: [q0..qH, k0..kH, v0..vH]
    w_in = params["in_proj_w"].astype(f32)                  # (3D, D)
    heads = []
    for role, role_scale in ((0, scale), (1, 1.0), (2, 1.0)):
        base = role * D_MODEL
        for h in range(N_HEAD):
            rows = w_in[base + h * HEAD_DIM: base + (h + 1) * HEAD_DIM, :]  # (hd, D)
            heads.append(rows.T * role_scale)                               # (D, hd)
    wqkv = jnp.stack(heads, axis=0)                          # (3*H, D, hd)

    wo = params["out_proj_w"].astype(f32).T                  # (D, D)
    w1 = params["lin1_w"].astype(f32).T                      # (D, D_FF)
    w2 = params["lin2_w"].astype(f32).T                      # (D_FF, D)
    wout = jnp.zeros((D_MODEL, V_PAD), f32).at[:, :VOCAB_SIZE].set(
        params["w_out"].astype(f32).T)

    # single packed bias/gain slab -> one DMA for all the tiny vectors
    def pad_row(v):
        v = v.astype(f32)
        return jnp.zeros((V_PAD,), f32).at[:v.shape[0]].set(v)

    b_in = params["in_proj_b"].astype(f32)
    rows = []
    for h in range(N_HEAD):                                  # bq_h (pre-scaled)
        rows.append(pad_row(b_in[h * HEAD_DIM:(h + 1) * HEAD_DIM] * scale))
    for h in range(N_HEAD):                                  # bk_h
        rows.append(pad_row(b_in[D_MODEL + h * HEAD_DIM: D_MODEL + (h + 1) * HEAD_DIM]))
    for h in range(N_HEAD):                                  # bv_h
        rows.append(pad_row(b_in[2 * D_MODEL + h * HEAD_DIM: 2 * D_MODEL + (h + 1) * HEAD_DIM]))
    rows += [pad_row(params["out_proj_b"]), pad_row(params["ln1_g"]),
             pad_row(params["ln1_b"]), pad_row(params["lin1_b"]),
             pad_row(params["lin2_b"]), pad_row(params["ln2_g"]),
             pad_row(params["ln2_b"]), pad_row(params["b_out"])]
    bias = jnp.stack(rows, axis=0)                           # (N_BIAS_ROWS, 128)
    assert bias.shape[0] == N_BIAS_ROWS

    # TODO(synk): cast matmul weights/activations to bf16 on v6e/v7x once B*S is
    # large enough for the MXU to bind; kept f32 here to hold the parity tolerance.
    return (emb, wqkv, wo, w1, w2, wout, bias)


def simple_lm_logits_padded(src, params, kernel_weights):
    """src: (B, S) int32 token ids -> (B*S, V_PAD) f32 lane-dense logits."""
    B, S = src.shape
    n = B * S

    # tiny per-call inputs; everything heavy is fused into the kernel
    ids2d = src.reshape(n, 1).astype(jnp.int32)
    pos = jnp.tile(params["pos_embedding"][:S].astype(jnp.float32), (B, 1))   # (n, D)
    causal = jnp.tril(jnp.ones((S, S), dtype=bool))
    mask = jnp.where(causal, 0.0, NEG_BIG).astype(jnp.float32)                # const-folded

    call_args = (ids2d, pos, mask) + tuple(kernel_weights)

    def full_spec(a):
        nd = a.ndim
        return pl.BlockSpec(a.shape, lambda i, _nd=nd: (0,) * _nd)

    flops = (2 * n * V_PAD * D_MODEL
             + 3 * N_HEAD * 2 * n * D_MODEL * HEAD_DIM
             + B * N_HEAD * (2 * S * S * HEAD_DIM) * 2
             + B * N_HEAD * 2 * S * HEAD_DIM * D_MODEL
             + 2 * (2 * n * D_MODEL * D_FF)
             + 2 * n * D_MODEL * V_PAD)
    transcendentals = B * N_HEAD * S * S
    bytes_accessed = 4 * (ids2d.size + pos.size + mask.size + n * V_PAD
                          + sum(int(w.size) for w in kernel_weights))

    kernel = functools.partial(_encoder_lm_kernel, batch=B, seq_len=S)

    return pl.pallas_call(
        kernel,
        out_shape=jax.ShapeDtypeStruct((n, V_PAD), jnp.float32),
        # TODO(synk): turn this into a "parallel" batch/query-tile axis for v7x
        # (2 TensorCores) once B*S grows beyond a single tile.
        grid=(1,),
        in_specs=[full_spec(a) for a in call_args],
        out_specs=pl.BlockSpec((n, V_PAD), lambda i: (0, 0)),
        scratch_shapes=[pltpu.VMEM((n, D_MODEL), jnp.float32)],
        compiler_params=pltpu.CompilerParams(dimension_semantics=("arbitrary",)),
        cost_estimate=pl.CostEstimate(flops=flops,
                                      transcendentals=transcendentals,
                                      bytes_accessed=bytes_accessed),
    )(*call_args)


def simple_lm_forward(src, params, kernel_weights):
    """Module-equivalent output: (B, S, vocab_size) f32 logits."""
    B, S = src.shape
    logits_pad = simple_lm_logits_padded(src, params, kernel_weights)
    return logits_pad[:, :VOCAB_SIZE].reshape(B, S, VOCAB_SIZE)


def reference_forward(src, params):
    """Pure-JAX replica of the PyTorch forward (eval mode), for verification."""
    B, S = src.shape
    with jax.default_matmul_precision("highest"):
        emb = params["embedding"][src] * math.sqrt(D_MODEL)
        x = emb + params["pos_embedding"][:S][None]
        mask = jnp.where(jnp.tril(jnp.ones((S, S), bool)), 0.0, -jnp.inf)

        def one(xb):
            qkv = xb @ params["in_proj_w"].T + params["in_proj_b"]
            q, k, v = jnp.split(qkv, 3, axis=-1)
            heads = []
            for h in range(N_HEAD):
                sl = slice(h * HEAD_DIM, (h + 1) * HEAD_DIM)
                s = (q[:, sl] / math.sqrt(HEAD_DIM)) @ k[:, sl].T + mask
                heads.append(jax.nn.softmax(s, axis=-1) @ v[:, sl])
            a = jnp.concatenate(heads, -1) @ params["out_proj_w"].T + params["out_proj_b"]
            x1 = xb + a
            x1 = ((x1 - x1.mean(-1, keepdims=True))
                  / jnp.sqrt(x1.var(-1, keepdims=True) + LN_EPS)) * params["ln1_g"] + params["ln1_b"]
            ff = jax.nn.relu(x1 @ params["lin1_w"].T + params["lin1_b"]) @ params["lin2_w"].T + params["lin2_b"]
            x2 = x1 + ff
            x2 = ((x2 - x2.mean(-1, keepdims=True))
                  / jnp.sqrt(x2.var(-1, keepdims=True) + LN_EPS)) * params["ln2_g"] + params["ln2_b"]
            return x2 @ params["w_out"].T + params["b_out"]

        return jax.vmap(one)(x)


if __name__ == "__main__":
    key = jax.random.PRNGKey(0)
    pkey, dkey = jax.random.split(key)

    params = init_params(pkey, VOCAB_SIZE)
    kernel_weights = prepare_kernel_weights(params)   # one-time weight prep

    B, S = 2, 8
    src = jax.random.randint(dkey, (B, S), 0, VOCAB_SIZE, dtype=jnp.int32)

    fwd = jax.jit(simple_lm_logits_padded)
    logits_pad = jax.block_until_ready(fwd(src, params, kernel_weights))   # (B*S, 128)

    # consumer-side slice back to vocab_size (kept out of the kernel wrapper)
    logits = logits_pad[:, :VOCAB_SIZE].reshape(B, S, VOCAB_SIZE)

    ref = reference_forward(src, params)
    assert logits.shape == (B, S, VOCAB_SIZE)
    assert jnp.allclose(logits, ref, atol=1e-3, rtol=1e-3), "mismatch vs reference"

    print("KERNEL_OK")
</pallas_src>

<mosaic_0001>
module attributes {stable_mosaic.version = 11 : i64} {
  func.func @_encoder_lm_kernel(%arg0: i32, %arg1: memref<16x1xi32, #tpu.memory_space<vmem>>, %arg2: memref<16x32xf32, #tpu.memory_space<vmem>>, %arg3: memref<8x8xf32, #tpu.memory_space<vmem>>, %arg4: memref<128x32xf32, #tpu.memory_space<vmem>>, %arg5: memref<6x32x16xf32, #tpu.memory_space<vmem>>, %arg6: memref<32x32xf32, #tpu.memory_space<vmem>>, %arg7: memref<32x128xf32, #tpu.memory_space<vmem>>, %arg8: memref<128x32xf32, #tpu.memory_space<vmem>>, %arg9: memref<32x128xf32, #tpu.memory_space<vmem>>, %arg10: memref<14x128xf32, #tpu.memory_space<vmem>>, %arg11: memref<16x128xf32, #tpu.memory_space<vmem>>, %arg12: memref<16x32xf32, #tpu.memory_space<vmem>>) attributes {dimension_semantics = [#tpu.dimension_semantics<arbitrary>], iteration_bounds = array<i64: 1>, scalar_prefetch = 0 : i64, scratch_operands = 1 : i64, tpu.core_type = #tpu.core_type<tc>, window_params = [{pipeline_mode = #tpu.pipeline_mode<synchronous>, transform_indices = @transform_0, window_bounds = array<i64: 16, 1>}, {pipeline_mode = #tpu.pipeline_mode<synchronous>, transform_indices = @transform_1, window_bounds = array<i64: 16, 32>}, {pipeline_mode = #tpu.pipeline_mode<synchronous>, transform_indices = @transform_2, window_bounds = array<i64: 8, 8>}, {pipeline_mode = #tpu.pipeline_mode<synchronous>, transform_indices = @transform_3, window_bounds = array<i64: 128, 32>}, {pipeline_mode = #tpu.pipeline_mode<synchronous>, transform_indices = @transform_4, window_bounds = array<i64: 6, 32, 16>}, {pipeline_mode = #tpu.pipeline_mode<synchronous>, transform_indices = @transform_5, window_bounds = array<i64: 32, 32>}, {pipeline_mode = #tpu.pipeline_mode<synchronous>, transform_indices = @transform_6, window_bounds = array<i64: 32, 128>}, {pipeline_mode = #tpu.pipeline_mode<synchronous>, transform_indices = @transform_7, window_bounds = array<i64: 128, 32>}, {pipeline_mode = #tpu.pipeline_mode<synchronous>, transform_indices = @transform_8, window_bounds = array<i64: 32, 128>}, {pipeline_mode = #tpu.pipeline_mode<synchronous>, transform_indices = @transform_9, window_bounds = array<i64: 14, 128>}, {pipeline_mode = #tpu.pipeline_mode<synchronous>, transform_indices = @transform_10, window_bounds = array<i64: 16, 128>}]} {
    %c0 = arith.constant 0 : index
    %c0_0 = arith.constant 0 : index
    %0 = vector.load %arg1[%c0, %c0_0] : memref<16x1xi32, #tpu.memory_space<vmem>>, vector<16x1xi32>
    %1 = tpu.iota {dimensions = array<i32: 1>} : vector<16x128xi32>
    %2 = vector.broadcast %0 : vector<16x1xi32> to vector<16x128xi32>
    %3 = arith.cmpi eq, %2, %1 : vector<16x128xi32>
    %4 = arith.extui %3 : vector<16x128xi1> to vector<16x128xi32>
    %5 = arith.sitofp %4 : vector<16x128xi32> to vector<16x128xf32>
    %c0_1 = arith.constant 0 : index
    %c0_2 = arith.constant 0 : index
    %6 = vector.load %arg4[%c0_1, %c0_2] : memref<128x32xf32, #tpu.memory_space<vmem>>, vector<128x32xf32>
    %cst = arith.constant dense<0.000000e+00> : vector<16x32xf32>
    %7 = tpu.matmul %5, %6, %cst {dimension_numbers = #tpu.dot_dimension_numbers<[1], [0], [0], [1], [0, 0, 1, 1], [], []>} : vector<16x128xf32>, vector<128x32xf32>, vector<16x32xf32> -> vector<16x32xf32>
    %c0_3 = arith.constant 0 : index
    %c0_4 = arith.constant 0 : index
    %8 = vector.load %arg2[%c0_3, %c0_4] : memref<16x32xf32, #tpu.memory_space<vmem>>, vector<16x32xf32>
    %9 = arith.addf %7, %8 : vector<16x32xf32>
    %c0_5 = arith.constant 0 : index
    %c0_6 = arith.constant 0 : index
    %c0_7 = arith.constant 0 : index
    %10 = vector.load %arg5[%c0_5, %c0_6, %c0_7] : memref<6x32x16xf32, #tpu.memory_space<vmem>>, vector<1x32x16xf32>
    %11 = vector.shape_cast %10 : vector<1x32x16xf32> to vector<32x16xf32>
    %cst_8 = arith.constant dense<0.000000e+00> : vector<16x16xf32>
    %12 = tpu.matmul %9, %11, %cst_8 {dimension_numbers = #tpu.dot_dimension_numbers<[1], [0], [0], [1], [0, 0, 1, 1], [], []>} : vector<16x32xf32>, vector<32x16xf32>, vector<16x16xf32> -> vector<16x16xf32>
    %c0_9 = arith.constant 0 : index
    %c0_10 = arith.constant 0 : index
    %13 = vector.load %arg10[%c0_9, %c0_10] : memref<14x128xf32, #tpu.memory_space<vmem>>, vector<1x16xf32>
    %14 = vector.broadcast %13 : vector<1x16xf32> to vector<16x16xf32>
    %15 = arith.addf %12, %14 : vector<16x16xf32>
    %c2 = arith.constant 2 : index
    %c0_11 = arith.constant 0 : index
    %c0_12 = arith.constant 0 : index
    %16 = vector.load %arg5[%c2, %c0_11, %c0_12] : memref<6x32x16xf32, #tpu.memory_space<vmem>>, vector<1x32x16xf32>
    %17 = vector.shape_cast %16 : vector<1x32x16xf32> to vector<32x16xf32>
    %cst_13 = arith.constant dense<0.000000e+00> : vector<16x16xf32>
    %18 = tpu.matmul %9, %17, %cst_13 {dimension_numbers = #tpu.dot_dimension_numbers<[1], [0], [0], [1], [0, 0, 1, 1], [], []>} : vector<16x32xf32>, vector<32x16xf32>, vector<16x16xf32> -> vector<16x16xf32>
    %c2_14 = arith.constant 2 : index
    %c0_15 = arith.constant 0 : index
    %19 = vector.load %arg10[%c2_14, %c0_15] : memref<14x128xf32, #tpu.memory_space<vmem>>, vector<1x16xf32>
    %20 = vector.broadcast %19 : vector<1x16xf32> to vector<16x16xf32>
    %21 = arith.addf %18, %20 : vector<16x16xf32>
    %c4 = arith.constant 4 : index
    %c0_16 = arith.constant 0 : index
    %c0_17 = arith.constant 0 : index
    %22 = vector.load %arg5[%c4, %c0_16, %c0_17] : memref<6x32x16xf32, #tpu.memory_space<vmem>>, vector<1x32x16xf32>
    %23 = vector.shape_cast %22 : vector<1x32x16xf32> to vector<32x16xf32>
    %cst_18 = arith.constant dense<0.000000e+00> : vector<16x16xf32>
    %24 = tpu.matmul %9, %23, %cst_18 {dimension_numbers = #tpu.dot_dimension_numbers<[1], [0], [0], [1], [0, 0, 1, 1], [], []>} : vector<16x32xf32>, vector<32x16xf32>, vector<16x16xf32> -> vector<16x16xf32>
    %c4_19 = arith.constant 4 : index
    %c0_20 = arith.constant 0 : index
    %25 = vector.load %arg10[%c4_19, %c0_20] : memref<14x128xf32, #tpu.memory_space<vmem>>, vector<1x16xf32>
    %26 = vector.broadcast %25 : vector<1x16xf32> to vector<16x16xf32>
    %27 = arith.addf %24, %26 : vector<16x16xf32>
    %c1 = arith.constant 1 : index
    %c0_21 = arith.constant 0 : index
    %c0_22 = arith.constant 0 : index
    %28 = vector.load %arg5[%c1, %c0_21, %c0_22] : memref<6x32x16xf32, #tpu.memory_space<vmem>>, vector<1x32x16xf32>
    %29 = vector.shape_cast %28 : vector<1x32x16xf32> to vector<32x16xf32>
    %cst_23 = arith.constant dense<0.000000e+00> : vector<16x16xf32>
    %30 = tpu.matmul %9, %29, %cst_23 {dimension_numbers = #tpu.dot_dimension_numbers<[1], [0], [0], [1], [0, 0, 1, 1], [], []>} : vector<16x32xf32>, vector<32x16xf32>, vector<16x16xf32> -> vector<16x16xf32>
    %c1_24 = arith.constant 1 : index
    %c0_25 = arith.constant 0 : index
    %31 = vector.load %arg10[%c1_24, %c0_25] : memref<14x128xf32, #tpu.memory_space<vmem>>, vector<1x16xf32>
    %32 = vector.broadcast %31 : vector<1x16xf32> to vector<16x16xf32>
    %33 = arith.addf %30, %32 : vector<16x16xf32>
    %c3 = arith.constant 3 : index
    %c0_26 = arith.constant 0 : index
    %c0_27 = arith.constant 0 : index
    %34 = vector.load %arg5[%c3, %c0_26, %c0_27] : memref<6x32x16xf32, #tpu.memory_space<vmem>>, vector<1x32x16xf32>
    %35 = vector.shape_cast %34 : vector<1x32x16xf32> to vector<32x16xf32>
    %cst_28 = arith.constant dense<0.000000e+00> : vector<16x16xf32>
    %36 = tpu.matmul %9, %35, %cst_28 {dimension_numbers = #tpu.dot_dimension_numbers<[1], [0], [0], [1], [0, 0, 1, 1], [], []>} : vector<16x32xf32>, vector<32x16xf32>, vector<16x16xf32> -> vector<16x16xf32>
    %c3_29 = arith.constant 3 : index
    %c0_30 = arith.constant 0 : index
    %37 = vector.load %arg10[%c3_29, %c0_30] : memref<14x128xf32, #tpu.memory_space<vmem>>, vector<1x16xf32>
    %38 = vector.broadcast %37 : vector<1x16xf32> to vector<16x16xf32>
    %39 = arith.addf %36, %38 : vector<16x16xf32>
    %c5 = arith.constant 5 : index
    %c0_31 = arith.constant 0 : index
    %c0_32 = arith.constant 0 : index
    %40 = vector.load %arg5[%c5, %c0_31, %c0_32] : memref<6x32x16xf32, #tpu.memory_space<vmem>>, vector<1x32x16xf32>
    %41 = vector.shape_cast %40 : vector<1x32x16xf32> to vector<32x16xf32>
    %cst_33 = arith.constant dense<0.000000e+00> : vector<16x16xf32>
    %42 = tpu.matmul %9, %41, %cst_33 {dimension_numbers = #tpu.dot_dimension_numbers<[1], [0], [0], [1], [0, 0, 1, 1], [], []>} : vector<16x32xf32>, vector<32x16xf32>, vector<16x16xf32> -> vector<16x16xf32>
    %c5_34 = arith.constant 5 : index
    %c0_35 = arith.constant 0 : index
    %43 = vector.load %arg10[%c5_34, %c0_35] : memref<14x128xf32, #tpu.memory_space<vmem>>, vector<1x16xf32>
    %44 = vector.broadcast %43 : vector<1x16xf32> to vector<16x16xf32>
    %45 = arith.addf %42, %44 : vector<16x16xf32>
    %c0_36 = arith.constant 0 : index
    %c0_37 = arith.constant 0 : index
    %46 = vector.load %arg3[%c0_36, %c0_37] : memref<8x8xf32, #tpu.memory_space<vmem>>, vector<8x8xf32>
    %47 = vector.extract_strided_slice %15 {offsets = [0, 0], sizes = [8, 16], strides = [1, 1]} : vector<16x16xf32> to vector<8x16xf32>
    %48 = vector.extract_strided_slice %21 {offsets = [0, 0], sizes = [8, 16], strides = [1, 1]} : vector<16x16xf32> to vector<8x16xf32>
    %49 = vector.extract_strided_slice %27 {offsets = [0, 0], sizes = [8, 16], strides = [1, 1]} : vector<16x16xf32> to vector<8x16xf32>
    %cst_38 = arith.constant dense<0.000000e+00> : vector<8x8xf32>
    %50 = tpu.matmul %47, %48, %cst_38 {dimension_numbers = #tpu.dot_dimension_numbers<[1], [1], [0], [0], [0, 0, 1, 0], [], []>} : vector<8x16xf32>, vector<8x16xf32>, vector<8x8xf32> -> vector<8x8xf32>
    %51 = arith.addf %50, %46 : vector<8x8xf32>
    %cst_39 = arith.constant dense<0xFF800000> : vector<8xf32>
    %52 = vector.multi_reduction <maximumf>, %51, %cst_39 [1] : vector<8x8xf32> to vector<8xf32>
    %53 = vector.shape_cast %52 : vector<8xf32> to vector<8x1xf32>
    %54 = vector.broadcast %53 : vector<8x1xf32> to vector<8x8xf32>
    %55 = arith.subf %51, %54 : vector<8x8xf32>
    %56 = math.exp %55 : vector<8x8xf32>
    %cst_40 = arith.constant dense<0.000000e+00> : vector<8xf32>
    %57 = vector.multi_reduction <add>, %56, %cst_40 [1] : vector<8x8xf32> to vector<8xf32>
    %58 = vector.shape_cast %57 : vector<8xf32> to vector<8x1xf32>
    %59 = vector.broadcast %58 : vector<8x1xf32> to vector<8x8xf32>
    %60 = arith.divf %56, %59 : vector<8x8xf32>
    %cst_41 = arith.constant dense<0.000000e+00> : vector<8x16xf32>
    %61 = tpu.matmul %60, %49, %cst_41 {dimension_numbers = #tpu.dot_dimension_numbers<[1], [0], [0], [1], [0, 0, 1, 1], [], []>} : vector<8x8xf32>, vector<8x16xf32>, vector<8x16xf32> -> vector<8x16xf32>
    %c0_42 = arith.constant 0 : index
    %c0_43 = arith.constant 0 : index
    %62 = vector.load %arg6[%c0_42, %c0_43] : memref<32x32xf32, #tpu.memory_space<vmem>>, vector<16x32xf32>
    %cst_44 = arith.constant dense<0.000000e+00> : vector<8x32xf32>
    %63 = tpu.matmul %61, %62, %cst_44 {dimension_numbers = #tpu.dot_dimension_numbers<[1], [0], [0], [1], [0, 0, 1, 1], [], []>} : vector<8x16xf32>, vector<16x32xf32>, vector<8x32xf32> -> vector<8x32xf32>
    %64 = vector.extract_strided_slice %33 {offsets = [0, 0], sizes = [8, 16], strides = [1, 1]} : vector<16x16xf32> to vector<8x16xf32>
    %65 = vector.extract_strided_slice %39 {offsets = [0, 0], sizes = [8, 16], strides = [1, 1]} : vector<16x16xf32> to vector<8x16xf32>
    %66 = vector.extract_strided_slice %45 {offsets = [0, 0], sizes = [8, 16], strides = [1, 1]} : vector<16x16xf32> to vector<8x16xf32>
    %cst_45 = arith.constant dense<0.000000e+00> : vector<8x8xf32>
    %67 = tpu.matmul %64, %65, %cst_45 {dimension_numbers = #tpu.dot_dimension_numbers<[1], [1], [0], [0], [0, 0, 1, 0], [], []>} : vector<8x16xf32>, vector<8x16xf32>, vector<8x8xf32> -> vector<8x8xf32>
    %68 = arith.addf %67, %46 : vector<8x8xf32>
    %cst_46 = arith.constant dense<0xFF800000> : vector<8xf32>
    %69 = vector.multi_reduction <maximumf>, %68, %cst_46 [1] : vector<8x8xf32> to vector<8xf32>
    %70 = vector.shape_cast %69 : vector<8xf32> to vector<8x1xf32>
    %71 = vector.broadcast %70 : vector<8x1xf32> to vector<8x8xf32>
    %72 = arith.subf %68, %71 : vector<8x8xf32>
    %73 = math.exp %72 : vector<8x8xf32>
    %cst_47 = arith.constant dense<0.000000e+00> : vector<8xf32>
    %74 = vector.multi_reduction <add>, %73, %cst_47 [1] : vector<8x8xf32> to vector<8xf32>
    %75 = vector.shape_cast %74 : vector<8xf32> to vector<8x1xf32>
    %76 = vector.broadcast %75 : vector<8x1xf32> to vector<8x8xf32>
    %77 = arith.divf %73, %76 : vector<8x8xf32>
    %cst_48 = arith.constant dense<0.000000e+00> : vector<8x16xf32>
    %78 = tpu.matmul %77, %66, %cst_48 {dimension_numbers = #tpu.dot_dimension_numbers<[1], [0], [0], [1], [0, 0, 1, 1], [], []>} : vector<8x8xf32>, vector<8x16xf32>, vector<8x16xf32> -> vector<8x16xf32>
    %c16 = arith.constant 16 : index
    %c0_49 = arith.constant 0 : index
    %79 = vector.load %arg6[%c16, %c0_49] : memref<32x32xf32, #tpu.memory_space<vmem>>, vector<16x32xf32>
    %cst_50 = arith.constant dense<0.000000e+00> : vector<8x32xf32>
    %80 = tpu.matmul %78, %79, %cst_50 {dimension_numbers = #tpu.dot_dimension_numbers<[1], [0], [0], [1], [0, 0, 1, 1], [], []>} : vector<8x16xf32>, vector<16x32xf32>, vector<8x32xf32> -> vector<8x32xf32>
    %81 = arith.addf %63, %80 : vector<8x32xf32>
    %c0_51 = arith.constant 0 : index
    %c0_52 = arith.constant 0 : index
    %82 = vector.load %arg12[%c0_51, %c0_52] : memref<16x32xf32, #tpu.memory_space<vmem>>, vector<8x32xf32>
    tpu.vector_store %arg12[%c0_51, %c0_52], %81 {strides = array<i32>} : memref<16x32xf32, #tpu.memory_space<vmem>>, vector<8x32xf32>,
    %83 = vector.extract_strided_slice %15 {offsets = [8, 0], sizes = [8, 16], strides = [1, 1]} : vector<16x16xf32> to vector<8x16xf32>
    %84 = vector.extract_strided_slice %21 {offsets = [8, 0], sizes = [8, 16], strides = [1, 1]} : vector<16x16xf32> to vector<8x16xf32>
    %85 = vector.extract_strided_slice %27 {offsets = [8, 0], sizes = [8, 16], strides = [1, 1]} : vector<16x16xf32> to vector<8x16xf32>
    %cst_53 = arith.constant dense<0.000000e+00> : vector<8x8xf32>
    %86 = tpu.matmul %83, %84, %cst_53 {dimension_numbers = #tpu.dot_dimension_numbers<[1], [1], [0], [0], [0, 0, 1, 0], [], []>} : vector<8x16xf32>, vector<8x16xf32>, vector<8x8xf32> -> vector<8x8xf32>
    %87 = arith.addf %86, %46 : vector<8x8xf32>
    %cst_54 = arith.constant dense<0xFF800000> : vector<8xf32>
    %88 = vector.multi_reduction <maximumf>, %87, %cst_54 [1] : vector<8x8xf32> to vector<8xf32>
    %89 = vector.shape_cast %88 : vector<8xf32> to vector<8x1xf32>
    %90 = vector.broadcast %89 : vector<8x1xf32> to vector<8x8xf32>
    %91 = arith.subf %87, %90 : vector<8x8xf32>
    %92 = math.exp %91 : vector<8x8xf32>
    %cst_55 = arith.constant dense<0.000000e+00> : vector<8xf32>
    %93 = vector.multi_reduction <add>, %92, %cst_55 [1] : vector<8x8xf32> to vector<8xf32>
    %94 = vector.shape_cast %93 : vector<8xf32> to vector<8x1xf32>
    %95 = vector.broadcast %94 : vector<8x1xf32> to vector<8x8xf32>
    %96 = arith.divf %92, %95 : vector<8x8xf32>
    %cst_56 = arith.constant dense<0.000000e+00> : vector<8x16xf32>
    %97 = tpu.matmul %96, %85, %cst_56 {dimension_numbers = #tpu.dot_dimension_numbers<[1], [0], [0], [1], [0, 0, 1, 1], [], []>} : vector<8x8xf32>, vector<8x16xf32>, vector<8x16xf32> -> vector<8x16xf32>
    %c0_57 = arith.constant 0 : index
    %c0_58 = arith.constant 0 : index
    %98 = vector.load %arg6[%c0_57, %c0_58] : memref<32x32xf32, #tpu.memory_space<vmem>>, vector<16x32xf32>
    %cst_59 = arith.constant dense<0.000000e+00> : vector<8x32xf32>
    %99 = tpu.matmul %97, %98, %cst_59 {dimension_numbers = #tpu.dot_dimension_numbers<[1], [0], [0], [1], [0, 0, 1, 1], [], []>} : vector<8x16xf32>, vector<16x32xf32>, vector<8x32xf32> -> vector<8x32xf32>
    %100 = vector.extract_strided_slice %33 {offsets = [8, 0], sizes = [8, 16], strides = [1, 1]} : vector<16x16xf32> to vector<8x16xf32>
    %101 = vector.extract_strided_slice %39 {offsets = [8, 0], sizes = [8, 16], strides = [1, 1]} : vector<16x16xf32> to vector<8x16xf32>
    %102 = vector.extract_strided_slice %45 {offsets = [8, 0], sizes = [8, 16], strides = [1, 1]} : vector<16x16xf32> to vector<8x16xf32>
    %cst_60 = arith.constant dense<0.000000e+00> : vector<8x8xf32>
    %103 = tpu.matmul %100, %101, %cst_60 {dimension_numbers = #tpu.dot_dimension_numbers<[1], [1], [0], [0], [0, 0, 1, 0], [], []>} : vector<8x16xf32>, vector<8x16xf32>, vector<8x8xf32> -> vector<8x8xf32>
    %104 = arith.addf %103, %46 : vector<8x8xf32>
    %cst_61 = arith.constant dense<0xFF800000> : vector<8xf32>
    %105 = vector.multi_reduction <maximumf>, %104, %cst_61 [1] : vector<8x8xf32> to vector<8xf32>
    %106 = vector.shape_cast %105 : vector<8xf32> to vector<8x1xf32>
    %107 = vector.broadcast %106 : vector<8x1xf32> to vector<8x8xf32>
    %108 = arith.subf %104, %107 : vector<8x8xf32>
    %109 = math.exp %108 : vector<8x8xf32>
    %cst_62 = arith.constant dense<0.000000e+00> : vector<8xf32>
    %110 = vector.multi_reduction <add>, %109, %cst_62 [1] : vector<8x8xf32> to vector<8xf32>
    %111 = vector.shape_cast %110 : vector<8xf32> to vector<8x1xf32>
    %112 = vector.broadcast %111 : vector<8x1xf32> to vector<8x8xf32>
    %113 = arith.divf %109, %112 : vector<8x8xf32>
    %cst_63 = arith.constant dense<0.000000e+00> : vector<8x16xf32>
    %114 = tpu.matmul %113, %102, %cst_63 {dimension_numbers = #tpu.dot_dimension_numbers<[1], [0], [0], [1], [0, 0, 1, 1], [], []>} : vector<8x8xf32>, vector<8x16xf32>, vector<8x16xf32> -> vector<8x16xf32>
    %c16_64 = arith.constant 16 : index
    %c0_65 = arith.constant 0 : index
    %115 = vector.load %arg6[%c16_64, %c0_65] : memref<32x32xf32, #tpu.memory_space<vmem>>, vector<16x32xf32>
    %cst_66 = arith.constant dense<0.000000e+00> : vector<8x32xf32>
    %116 = tpu.matmul %114, %115, %cst_66 {dimension_numbers = #tpu.dot_dimension_numbers<[1], [0], [0], [1], [0, 0, 1, 1], [], []>} : vector<8x16xf32>, vector<16x32xf32>, vector<8x32xf32> -> vector<8x32xf32>
    %117 = arith.addf %99, %116 : vector<8x32xf32>
    %c8 = arith.constant 8 : index
    %c0_67 = arith.constant 0 : index
    %118 = vector.load %arg12[%c8, %c0_67] : memref<16x32xf32, #tpu.memory_space<vmem>>, vector<8x32xf32>
    tpu.vector_store %arg12[%c8, %c0_67], %117 {strides = array<i32>} : memref<16x32xf32, #tpu.memory_space<vmem>>, vector<8x32xf32>,
    %c0_68 = arith.constant 0 : index
    %c0_69 = arith.constant 0 : index
    %119 = vector.load %arg12[%c0_68, %c0_69] : memref<16x32xf32, #tpu.memory_space<vmem>>, vector<16x32xf32>
    %c6 = arith.constant 6 : index
    %c0_70 = arith.constant 0 : index
    %120 = vector.load %arg10[%c6, %c0_70] : memref<14x128xf32, #tpu.memory_space<vmem>>, vector<1x32xf32>
    %121 = vector.broadcast %120 : vector<1x32xf32> to vector<16x32xf32>
    %122 = arith.addf %119, %121 : vector<16x32xf32>
    %123 = arith.addf %9, %122 : vector<16x32xf32>
    %cst_71 = arith.constant dense<0.000000e+00> : vector<16xf32>
    %124 = vector.multi_reduction <add>, %123, %cst_71 [1] : vector<16x32xf32> to vector<16xf32>
    %125 = vector.shape_cast %124 : vector<16xf32> to vector<16x1xf32>
    %cst_72 = arith.constant 3.200000e+01 : f32
    %126 = vector.broadcast %cst_72 : f32 to vector<16x1xf32>
    %127 = arith.divf %125, %126 : vector<16x1xf32>
    %128 = vector.broadcast %127 : vector<16x1xf32> to vector<16x32xf32>
    %129 = arith.subf %123, %128 : vector<16x32xf32>
    %130 = arith.mulf %129, %129 : vector<16x32xf32>
    %cst_73 = arith.constant dense<0.000000e+00> : vector<16xf32>
    %131 = vector.multi_reduction <add>, %130, %cst_73 [1] : vector<16x32xf32> to vector<16xf32>
    %132 = vector.shape_cast %131 : vector<16xf32> to vector<16x1xf32>
    %cst_74 = arith.constant 3.200000e+01 : f32
    %133 = vector.broadcast %cst_74 : f32 to vector<16x1xf32>
    %134 = arith.divf %132, %133 : vector<16x1xf32>
    %135 = vector.broadcast %127 : vector<16x1xf32> to vector<16x32xf32>
    %136 = arith.subf %123, %135 : vector<16x32xf32>
    %cst_75 = arith.constant 9.99999974E-6 : f32
    %137 = vector.broadcast %cst_75 : f32 to vector<16x1xf32>
    %138 = arith.addf %134, %137 : vector<16x1xf32>
    %139 = math.rsqrt %138 : vector<16x1xf32>
    %140 = vector.broadcast %139 : vector<16x1xf32> to vector<16x32xf32>
    %141 = arith.mulf %136, %140 : vector<16x32xf32>
    %c7 = arith.constant 7 : index
    %c0_76 = arith.constant 0 : index
    %142 = vector.load %arg10[%c7, %c0_76] : memref<14x128xf32, #tpu.memory_space<vmem>>, vector<1x32xf32>
    %143 = vector.broadcast %142 : vector<1x32xf32> to vector<16x32xf32>
    %144 = arith.mulf %141, %143 : vector<16x32xf32>
    %c8_77 = arith.constant 8 : index
    %c0_78 = arith.constant 0 : index
    %145 = vector.load %arg10[%c8_77, %c0_78] : memref<14x128xf32, #tpu.memory_space<vmem>>, vector<1x32xf32>
    %146 = vector.broadcast %145 : vector<1x32xf32> to vector<16x32xf32>
    %147 = arith.addf %144, %146 : vector<16x32xf32>
    %c0_79 = arith.constant 0 : index
    %c0_80 = arith.constant 0 : index
    %148 = vector.load %arg7[%c0_79, %c0_80] : memref<32x128xf32, #tpu.memory_space<vmem>>, vector<32x128xf32>
    %cst_81 = arith.constant dense<0.000000e+00> : vector<16x128xf32>
    %149 = tpu.matmul %147, %148, %cst_81 {dimension_numbers = #tpu.dot_dimension_numbers<[1], [0], [0], [1], [0, 0, 1, 1], [], []>} : vector<16x32xf32>, vector<32x128xf32>, vector<16x128xf32> -> vector<16x128xf32>
    %c9 = arith.constant 9 : index
    %c0_82 = arith.constant 0 : index
    %150 = vector.load %arg10[%c9, %c0_82] : memref<14x128xf32, #tpu.memory_space<vmem>>, vector<1x128xf32>
    %151 = vector.broadcast %150 : vector<1x128xf32> to vector<16x128xf32>
    %152 = arith.addf %149, %151 : vector<16x128xf32>
    %cst_83 = arith.constant 0.000000e+00 : f32
    %153 = vector.broadcast %cst_83 : f32 to vector<16x128xf32>
    %154 = arith.maximumf %152, %153 : vector<16x128xf32>
    %c0_84 = arith.constant 0 : index
    %c0_85 = arith.constant 0 : index
    %155 = vector.load %arg8[%c0_84, %c0_85] : memref<128x32xf32, #tpu.memory_space<vmem>>, vector<128x32xf32>
    %cst_86 = arith.constant dense<0.000000e+00> : vector<16x32xf32>
    %156 = tpu.matmul %154, %155, %cst_86 {dimension_numbers = #tpu.dot_dimension_numbers<[1], [0], [0], [1], [0, 0, 1, 1], [], []>} : vector<16x128xf32>, vector<128x32xf32>, vector<16x32xf32> -> vector<16x32xf32>
    %c10 = arith.constant 10 : index
    %c0_87 = arith.constant 0 : index
    %157 = vector.load %arg10[%c10, %c0_87] : memref<14x128xf32, #tpu.memory_space<vmem>>, vector<1x32xf32>
    %158 = vector.broadcast %157 : vector<1x32xf32> to vector<16x32xf32>
    %159 = arith.addf %156, %158 : vector<16x32xf32>
    %160 = arith.addf %147, %159 : vector<16x32xf32>
    %cst_88 = arith.constant dense<0.000000e+00> : vector<16xf32>
    %161 = vector.multi_reduction <add>, %160, %cst_88 [1] : vector<16x32xf32> to vector<16xf32>
    %162 = vector.shape_cast %161 : vector<16xf32> to vector<16x1xf32>
    %cst_89 = arith.constant 3.200000e+01 : f32
    %163 = vector.broadcast %cst_89 : f32 to vector<16x1xf32>
    %164 = arith.divf %162, %163 : vector<16x1xf32>
    %165 = vector.broadcast %164 : vector<16x1xf32> to vector<16x32xf32>
    %166 = arith.subf %160, %165 : vector<16x32xf32>
    %167 = arith.mulf %166, %166 : vector<16x32xf32>
    %cst_90 = arith.constant dense<0.000000e+00> : vector<16xf32>
    %168 = vector.multi_reduction <add>, %167, %cst_90 [1] : vector<16x32xf32> to vector<16xf32>
    %169 = vector.shape_cast %168 : vector<16xf32> to vector<16x1xf32>
    %cst_91 = arith.constant 3.200000e+01 : f32
    %170 = vector.broadcast %cst_91 : f32 to vector<16x1xf32>
    %171 = arith.divf %169, %170 : vector<16x1xf32>
    %172 = vector.broadcast %164 : vector<16x1xf32> to vector<16x32xf32>
    %173 = arith.subf %160, %172 : vector<16x32xf32>
    %cst_92 = arith.constant 9.99999974E-6 : f32
    %174 = vector.broadcast %cst_92 : f32 to vector<16x1xf32>
    %175 = arith.addf %171, %174 : vector<16x1xf32>
    %176 = math.rsqrt %175 : vector<16x1xf32>
    %177 = vector.broadcast %176 : vector<16x1xf32> to vector<16x32xf32>
    %178 = arith.mulf %173, %177 : vector<16x32xf32>
    %c11 = arith.constant 11 : index
    %c0_93 = arith.constant 0 : index
    %179 = vector.load %arg10[%c11, %c0_93] : memref<14x128xf32, #tpu.memory_space<vmem>>, vector<1x32xf32>
    %180 = vector.broadcast %179 : vector<1x32xf32> to vector<16x32xf32>
    %181 = arith.mulf %178, %180 : vector<16x32xf32>
    %c12 = arith.constant 12 : index
    %c0_94 = arith.constant 0 : index
    %182 = vector.load %arg10[%c12, %c0_94] : memref<14x128xf32, #tpu.memory_space<vmem>>, vector<1x32xf32>
    %183 = vector.broadcast %182 : vector<1x32xf32> to vector<16x32xf32>
    %184 = arith.addf %181, %183 : vector<16x32xf32>
    %c0_95 = arith.constant 0 : index
    %c0_96 = arith.constant 0 : index
    %185 = vector.load %arg9[%c0_95, %c0_96] : memref<32x128xf32, #tpu.memory_space<vmem>>, vector<32x128xf32>
    %cst_97 = arith.constant dense<0.000000e+00> : vector<16x128xf32>
    %186 = tpu.matmul %184, %185, %cst_97 {dimension_numbers = #tpu.dot_dimension_numbers<[1], [0], [0], [1], [0, 0, 1, 1], [], []>} : vector<16x32xf32>, vector<32x128xf32>, vector<16x128xf32> -> vector<16x128xf32>
    %c13 = arith.constant 13 : index
    %c0_98 = arith.constant 0 : index
    %187 = vector.load %arg10[%c13, %c0_98] : memref<14x128xf32, #tpu.memory_space<vmem>>, vector<1x128xf32>
    %188 = vector.broadcast %187 : vector<1x128xf32> to vector<16x128xf32>
    %189 = arith.addf %186, %188 : vector<16x128xf32>
    %c0_99 = arith.constant 0 : index
    %c0_100 = arith.constant 0 : index
    %190 = vector.load %arg11[%c0_99, %c0_100] : memref<16x128xf32, #tpu.memory_space<vmem>>, vector<16x128xf32>
    tpu.vector_store %arg11[%c0_99, %c0_100], %189 {strides = array<i32>} : memref<16x128xf32, #tpu.memory_space<vmem>>, vector<16x128xf32>,
    return
  }
  func.func @transform_0(%arg0: i32) -> (i32, i32) {
    %c0_i32 = arith.constant 0 : i32
    %c0_i32_0 = arith.constant 0 : i32
    %c0_i32_1 = arith.constant 0 : i32
    return %c0_i32, %c0_i32_0 : i32, i32
  }
  func.func @transform_1(%arg0: i32) -> (i32, i32) {
    %c0_i32 = arith.constant 0 : i32
    %c0_i32_0 = arith.constant 0 : i32
    %c0_i32_1 = arith.constant 0 : i32
    return %c0_i32, %c0_i32_0 : i32, i32
  }
  func.func @transform_2(%arg0: i32) -> (i32, i32) {
    %c0_i32 = arith.constant 0 : i32
    %c0_i32_0 = arith.constant 0 : i32
    %c0_i32_1 = arith.constant 0 : i32
    return %c0_i32, %c0_i32_0 : i32, i32
  }
  func.func @transform_3(%arg0: i32) -> (i32, i32) {
    %c0_i32 = arith.constant 0 : i32
    %c0_i32_0 = arith.constant 0 : i32
    %c0_i32_1 = arith.constant 0 : i32
    return %c0_i32, %c0_i32_0 : i32, i32
  }
  func.func @transform_4(%arg0: i32) -> (i32, i32, i32) {
    %c0_i32 = arith.constant 0 : i32
    %c0_i32_0 = arith.constant 0 : i32
    %c0_i32_1 = arith.constant 0 : i32
    %c0_i32_2 = arith.constant 0 : i32
    return %c0_i32, %c0_i32_0, %c0_i32_1 : i32, i32, i32
  }
  func.func @transform_5(%arg0: i32) -> (i32, i32) {
    %c0_i32 = arith.constant 0 : i32
    %c0_i32_0 = arith.constant 0 : i32
    %c0_i32_1 = arith.constant 0 : i32
    return %c0_i32, %c0_i32_0 : i32, i32
  }
  func.func @transform_6(%arg0: i32) -> (i32, i32) {
    %c0_i32 = arith.constant 0 : i32
    %c0_i32_0 = arith.constant 0 : i32
    %c0_i32_1 = arith.constant 0 : i32
    return %c0_i32, %c0_i32_0 : i32, i32
  }
  func.func @transform_7(%arg0: i32) -> (i32, i32) {
    %c0_i32 = arith.constant 0 : i32
    %c0_i32_0 = arith.constant 0 : i32
    %c0_i32_1 = arith.constant 0 : i32
    return %c0_i32, %c0_i32_0 : i32, i32
  }
  func.func @transform_8(%arg0: i32) -> (i32, i32) {
    %c0_i32 = arith.constant 0 : i32
    %c0_i32_0 = arith.constant 0 : i32
    %c0_i32_1 = arith.constant 0 : i32
    return %c0_i32, %c0_i32_0 : i32, i32
  }
  func.func @transform_9(%arg0: i32) -> (i32, i32) {
    %c0_i32 = arith.constant 0 : i32
    %c0_i32_0 = arith.constant 0 : i32
    %c0_i32_1 = arith.constant 0 : i32
    return %c0_i32, %c0_i32_0 : i32, i32
  }
  func.func @transform_10(%arg0: i32) -> (i32, i32) {
    %c0_i32 = arith.constant 0 : i32
    %c0_i32_0 = arith.constant 0 : i32
    %c0_i32_1 = arith.constant 0 : i32
    return %c0_i32, %c0_i32_0 : i32, i32
  }
}

</mosaic_0001>

<llo_original>
// kernel: simple_lm_logits_padded.1
$region0: #{simple_lm_logits_padded.1}
  #allocation0 [shape = 'u32[]', space=smem, size = 0x4, offset = 0x4, fixed_abs, tag = 'smem constant byte address 0x4 - core index']
  #allocation1 [shape = 'u32[144,128]{1,0:T(1,128)}', space=vmem, size = 0x12000, scoped, tag = 'internal scratch']
  #allocation2 [shape = 'f32[16,32]{1,0:T(8,128)}', space=vmem, size = 0x2000, scoped, tag = 'scratch operand']
  %s0 = inlined_call_operand.vmem [shape: s32[16,1], index: 0, kind: input, shape index: {}]
  %s1 = inlined_call_operand.vmem [shape: f32[16,32], index: 1, kind: input, shape index: {}]
  %s2 = inlined_call_operand.vmem [shape: f32[8,8], index: 2, kind: input, shape index: {}]
  %s3 = inlined_call_operand.vmem [shape: f32[128,32], index: 3, kind: input, shape index: {}]
  %s4 = inlined_call_operand.vmem [shape: f32[6,32,16], index: 4, kind: input, shape index: {}]
  %s5 = inlined_call_operand.vmem [shape: f32[32,32], index: 5, kind: input, shape index: {}]
  %s6 = inlined_call_operand.vmem [shape: f32[32,128], index: 6, kind: input, shape index: {}]
  %s7 = inlined_call_operand.vmem [shape: f32[128,32], index: 7, kind: input, shape index: {}]
  %s8 = inlined_call_operand.vmem [shape: f32[32,128], index: 8, kind: input, shape index: {}]
  %s9 = inlined_call_operand.vmem [shape: f32[14,128], index: 9, kind: input, shape index: {}]
  %s10 = inlined_call_operand.hbm [shape: f32[16,128], index: 10, kind: output, shape index: {}]
  %s11 = sld [smem:[#allocation0]]
  $region50: #{simple_lm_logits_padded.1} parent=0
    _
  %s13 = ssub.s32 1, %s11
  %s14 = scalar_select 0, %s13, %s11
  $region1: #{simple_lm_logits_padded.1} parent=0
    #allocation3 [shape = 'u8[8192]{0}', space=vmem, size = 0x2000, scoped, tag = 'output window, operand 0, single buffered']
    #allocation4 [shape = 's32[1]{0}', space=sflag, size = 0x4, scoped, tag = 'scoped memory for simple_lm_logits_padded.1']
    %15 = vsyncpa [#allocation4], 0
    // Predicated region
    $region2: #{simple_lm_logits_padded.1} parent=1 // pred_check
      _
    $region3: #{simple_lm_logits_padded.1} parent=1 // pred_check_branch
      %17 = sbr.rel (0) target = $region5
    $region4: #{simple_lm_logits_padded.1} parent=1 // pred_region
      _
    $region5: #{simple_lm_logits_padded.1} parent=1 // pred_fallthru
      _
    // Predicated region
    $region6: #{simple_lm_logits_padded.1} parent=1 // pred_check
      _
    $region7: #{simple_lm_logits_padded.1} parent=1 // pred_check_branch
      %19 = sbr.rel (0) target = $region9
    $region8: #{simple_lm_logits_padded.1} parent=1 // pred_region
      _
    $region9: #{simple_lm_logits_padded.1} parent=1 // pred_fallthru
      _
    // Predicated region
    $region10: #{simple_lm_logits_padded.1} parent=1 // pred_check
      _
    $region11: #{simple_lm_logits_padded.1} parent=1 // pred_check_branch
      %21 = sbr.rel (0) target = $region13
    $region12: #{simple_lm_logits_padded.1} parent=1 // pred_region
      _
    $region13: #{simple_lm_logits_padded.1} parent=1 // pred_fallthru
      _
    // Predicated region
    $region14: #{simple_lm_logits_padded.1} parent=1 // pred_check
      _
    $region15: #{simple_lm_logits_padded.1} parent=1 // pred_check_branch
      %23 = sbr.rel (0) target = $region17
    $region16: #{simple_lm_logits_padded.1} parent=1 // pred_region
      _
    $region17: #{simple_lm_logits_padded.1} parent=1 // pred_fallthru
      _
    // Predicated region
    $region18: #{simple_lm_logits_padded.1} parent=1 // pred_check
      _
    $region19: #{simple_lm_logits_padded.1} parent=1 // pred_check_branch
      %25 = sbr.rel (0) target = $region21
    $region20: #{simple_lm_logits_padded.1} parent=1 // pred_region
      _
    $region21: #{simple_lm_logits_padded.1} parent=1 // pred_fallthru
      _
    // Predicated region
    $region22: #{simple_lm_logits_padded.1} parent=1 // pred_check
      _
    $region23: #{simple_lm_logits_padded.1} parent=1 // pred_check_branch
      %27 = sbr.rel (0) target = $region25
    $region24: #{simple_lm_logits_padded.1} parent=1 // pred_region
      _
    $region25: #{simple_lm_logits_padded.1} parent=1 // pred_fallthru
      _
    // Predicated region
    $region26: #{simple_lm_logits_padded.1} parent=1 // pred_check
      _
    $region27: #{simple_lm_logits_padded.1} parent=1 // pred_check_branch
      %29 = sbr.rel (0) target = $region29
    $region28: #{simple_lm_logits_padded.1} parent=1 // pred_region
      _
    $region29: #{simple_lm_logits_padded.1} parent=1 // pred_fallthru
      _
    // Predicated region
    $region30: #{simple_lm_logits_padded.1} parent=1 // pred_check
      _
    $region31: #{simple_lm_logits_padded.1} parent=1 // pred_check_branch
      %31 = sbr.rel (0) target = $region33
    $region32: #{simple_lm_logits_padded.1} parent=1 // pred_region
      _
    $region33: #{simple_lm_logits_padded.1} parent=1 // pred_fallthru
      _
    // Predicated region
    $region34: #{simple_lm_logits_padded.1} parent=1 // pred_check
      _
    $region35: #{simple_lm_logits_padded.1} parent=1 // pred_check_branch
      %33 = sbr.rel (0) target = $region37
    $region36: #{simple_lm_logits_padded.1} parent=1 // pred_region
      _
    $region37: #{simple_lm_logits_padded.1} parent=1 // pred_fallthru
      _
    // Predicated region
    $region38: #{simple_lm_logits_padded.1} parent=1 // pred_check
      _
    $region39: #{simple_lm_logits_padded.1} parent=1 // pred_check_branch
      %35 = sbr.rel (0) target = $region41
    $region40: #{simple_lm_logits_padded.1} parent=1 // pred_region
      _
    $region41: #{simple_lm_logits_padded.1} parent=1 // pred_fallthru
      _
    %v36 = vld [vmem:[%s0] sm:$0xff]
    %v37 = vld [vmem:[%s0 + $0x8] sm:$0xff]
    %v38 = vlaneseq
    %v39 = vand.u32 %v38, 127
    %40 = vset.pattern.permute.xlu0 0
    %41 = vperm.xlu0 %40, %v36
    %v42 = vpop.permute.xlu0 %41
    %43 = vset.pattern.permute.xlu0 0
    %44 = vperm.xlu0 %43, %v37
    %v45 = vpop.permute.xlu0 %44
    %vm46 = vcmp.eq.s32.totalorder %v42, %v39
    %vm47 = vcmp.eq.s32.totalorder %v45, %v39
    %v48 = vsel %vm46, 1, 0
    %v49 = vsel %vm47, 1, 0
    %v50 = vcvt.s32.f32 %v48
    %v51 = vcvt.s32.f32 %v49
    %v52 = vld [vmem:[%s3] sm:$0xff]
    %v53 = vld [vmem:[%s3 + $0x8] sm:$0xff]
    %v54 = vld [vmem:[%s3 + $0x10] sm:$0xff]
    %v55 = vld [vmem:[%s3 + $0x18] sm:$0xff]
    %v56 = vld [vmem:[%s3 + $0x20] sm:$0xff]
    %v57 = vld [vmem:[%s3 + $0x28] sm:$0xff]
    %v58 = vld [vmem:[%s3 + $0x30] sm:$0xff]
    %v59 = vld [vmem:[%s3 + $0x38] sm:$0xff]
    %v60 = vld [vmem:[%s3 + $0x40] sm:$0xff]
    %v61 = vld [vmem:[%s3 + $0x48] sm:$0xff]
    %v62 = vld [vmem:[%s3 + $0x50] sm:$0xff]
    %v63 = vld [vmem:[%s3 + $0x58] sm:$0xff]
    %v64 = vld [vmem:[%s3 + $0x60] sm:$0xff]
    %v65 = vld [vmem:[%s3 + $0x68] sm:$0xff]
    %v66 = vld [vmem:[%s3 + $0x70] sm:$0xff]
    %v67 = vld [vmem:[%s3 + $0x78] sm:$0xff]
    %v68 = vld [vmem:[%s1] sm:$0xff]
    %v69 = vld [vmem:[%s1 + $0x8] sm:$0xff]
    %70 = vmatprep.subr.mxu0 0.0
    %71 = vmatpush1.msra.mxu0 %v52
    %72 = vmatprep.subr.mxu0 0.0
    %73 = vmatpush1.msra.mxu0 %v53
    %74 = vmatprep.subr.mxu0 0.0
    %75 = vmatpush1.msra.mxu0 %v54
    %76 = vmatprep.subr.mxu0 0.0
    %77 = vmatpush1.msra.mxu0 %v55
    %78 = vmatprep.subr.mxu0 0.0
    %79 = vmatpush1.msra.mxu0 %v56
    %80 = vmatprep.subr.mxu0 0.0
    %81 = vmatpush1.msra.mxu0 %v57
    %82 = vmatprep.subr.mxu0 0.0
    %83 = vmatpush1.msra.mxu0 %v58
    %84 = vmatprep.subr.mxu0 0.0
    %85 = vmatpush1.msra.mxu0 %v59
    %86 = vmatprep.subr.mxu0 0.0
    %87 = vmatpush1.msra.mxu0 %v60
    %88 = vmatprep.subr.mxu0 0.0
    %89 = vmatpush1.msra.mxu0 %v61
    %90 = vmatprep.subr.mxu0 0.0
    %91 = vmatpush1.msra.mxu0 %v62
    %92 = vmatprep.subr.mxu0 0.0
    %93 = vmatpush1.msra.mxu0 %v63
    %94 = vmatprep.subr.mxu0 0.0
    %95 = vmatpush1.msra.mxu0 %v64
    %96 = vmatprep.subr.mxu0 0.0
    %97 = vmatpush1.msra.mxu0 %v65
    %98 = vmatprep.subr.mxu0 0.0
    %99 = vmatpush1.msra.mxu0 %v66
    %100 = vmatprep.subr.mxu0 0.0
    %101 = vmatpush1.msra.mxu0 %v67
    %102 = vmatprep.subr.mxu0 0.0
    %103 = vmatpush1.msra.mxu0 0.0
    %104 = vmatprep.subr.mxu0 0.0
    %105 = vmatpush1.msra.mxu0 0.0
    %106 = vmatprep.subr.mxu0 0.0
    %107 = vmatpush1.msra.mxu0 0.0
    %108 = vmatprep.subr.mxu0 0.0
    %109 = vmatpush1.msra.mxu0 0.0
    %110 = vmatprep.subr.mxu0 0.0
    %111 = vmatpush1.msra.mxu0 0.0
    %112 = vmatprep.subr.mxu0 0.0
    %113 = vmatpush1.msra.mxu0 0.0
    %114 = vmatprep.subr.mxu0 0.0
    %115 = vmatpush1.msra.mxu0 0.0
    %116 = vmatprep.subr.mxu0 0.0
    %117 = vmatpush1.msra.mxu0 0.0
    %118 = vmatprep.subr.mxu0 0.0
    %119 = vmatpush1.msra.mxu0 0.0
    %120 = vmatprep.subr.mxu0 0.0
    %121 = vmatpush1.msra.mxu0 0.0
    %122 = vmatprep.subr.mxu0 0.0
    %123 = vmatpush1.msra.mxu0 0.0
    %124 = vmatprep.subr.mxu0 0.0
    %125 = vmatpush1.msra.mxu0 0.0
    %126 = vmatprep.subr.mxu0 0.0
    %127 = vmatpush1.msra.mxu0 0.0
    %128 = vmatprep.subr.mxu0 0.0
    %129 = vmatpush1.msra.mxu0 0.0
    %130 = vmatprep.subr.mxu0 0.0
    %131 = vmatpush1.msra.mxu0 0.0
    %132 = vmatprep.subr.mxu0 0.0
    %133 = vmatpush1.msra.mxu0 0.0
    %134 = vmatprep.mubr.f32.mxu0 0.0
    %135 = vmatmul.mubr.f32.gmra.mrb[0].mxu0 %v50
    %v136 = vpop.f32.mrb[0].mxu0
    %v137 = vadd.f32 %v68, %v136
    %v138 = vpop.f32.mrb[0].mxu0
    %139 = vmatprep.mubr.f32.mxu0 0.0
    %140 = vmatmul.mubr.f32.gmra.mrb[0].mxu0 %v51
    %v141 = vpop.f32.mrb[0].mxu0
    %v142 = vadd.f32 %v69, %v141
    %v143 = vpop.f32.mrb[0].mxu0
    %144 = vdwg.mxu0
    %v145 = vld [vmem:[%s4] sm:$0xff]
    %v146 = vld [vmem:[%s4 + $0x8] sm:$0xff]
    %v147 = vld [vmem:[%s4 + $0x10] sm:$0xff]
    %v148 = vld [vmem:[%s4 + $0x18] sm:$0xff]
    %v149 = vld [vmem:[%s9] sm:$0x1]
    %v150 = vlaneseq
    %v151 = vshrl.u32 %v150, 7
    %v152 = vsub.s32 0, %v151
    %v153 = vrot.slane %v149, %v152
    %vm154 = vcmask 261120
    %v156 = vsel %vm154, %v137, 0
    %v159 = vsel %vm154, %v142, 0
    %161 = vmatprep.subr.mxu0 0.0
    %162 = vmatpush1.msra.mxu0 %v145
    %163 = vmatprep.subr.mxu0 0.0
    %164 = vmatpush1.msra.mxu0 %v146
    %165 = vmatprep.subr.mxu0 0.0
    %166 = vmatpush1.msra.mxu0 %v147
    %167 = vmatprep.subr.mxu0 0.0
    %168 = vmatpush1.msra.mxu0 %v148
    %169 = vmatprep.subr.mxu0 0.0
    %170 = vmatpush1.msra.mxu0 0.0
    %171 = vmatprep.subr.mxu0 0.0
    %172 = vmatpush1.msra.mxu0 0.0
    %173 = vmatprep.subr.mxu0 0.0
    %174 = vmatpush1.msra.mxu0 0.0
    %175 = vmatprep.subr.mxu0 0.0
    %176 = vmatpush1.msra.mxu0 0.0
    %177 = vmatprep.subr.mxu0 0.0
    %178 = vmatpush1.msra.mxu0 0.0
    %179 = vmatprep.subr.mxu0 0.0
    %180 = vmatpush1.msra.mxu0 0.0
    %181 = vmatprep.subr.mxu0 0.0
    %182 = vmatpush1.msra.mxu0 0.0
    %183 = vmatprep.subr.mxu0 0.0
    %184 = vmatpush1.msra.mxu0 0.0
    %185 = vmatprep.subr.mxu0 0.0
    %186 = vmatpush1.msra.mxu0 0.0
    %187 = vmatprep.subr.mxu0 0.0
    %188 = vmatpush1.msra.mxu0 0.0
    %189 = vmatprep.subr.mxu0 0.0
    %190 = vmatpush1.msra.mxu0 0.0
    %191 = vmatprep.subr.mxu0 0.0
    %192 = vmatpush1.msra.mxu0 0.0
    %193 = vmatprep.subr.mxu0 0.0
    %194 = vmatpush1.msra.mxu0 0.0
    %195 = vmatprep.subr.mxu0 0.0
    %196 = vmatpush1.msra.mxu0 0.0
    %197 = vmatprep.subr.mxu0 0.0
    %198 = vmatpush1.msra.mxu0 0.0
    %199 = vmatprep.subr.mxu0 0.0
    %200 = vmatpush1.msra.mxu0 0.0
    %201 = vmatprep.subr.mxu0 0.0
    %202 = vmatpush1.msra.mxu0 0.0
    %203 = vmatprep.subr.mxu0 0.0
    %204 = vmatpush1.msra.mxu0 0.0
    %205 = vmatprep.subr.mxu0 0.0
    %206 = vmatpush1.msra.mxu0 0.0
    %207 = vmatprep.subr.mxu0 0.0
    %208 = vmatpush1.msra.mxu0 0.0
    %209 = vmatprep.subr.mxu0 0.0
    %210 = vmatpush1.msra.mxu0 0.0
    %211 = vmatprep.subr.mxu0 0.0
    %212 = vmatpush1.msra.mxu0 0.0
    %213 = vmatprep.subr.mxu0 0.0
    %214 = vmatpush1.msra.mxu0 0.0
    %215 = vmatprep.subr.mxu0 0.0
    %216 = vmatpush1.msra.mxu0 0.0
    %217 = vmatprep.subr.mxu0 0.0
    %218 = vmatpush1.msra.mxu0 0.0
    %219 = vmatprep.subr.mxu0 0.0
    %220 = vmatpush1.msra.mxu0 0.0
    %221 = vmatprep.subr.mxu0 0.0
    %222 = vmatpush1.msra.mxu0 0.0
    %223 = vmatprep.subr.mxu0 0.0
    %224 = vmatpush1.msra.mxu0 0.0
    %225 = vmatprep.mubr.f32.mxu0 0.0
    %226 = vmatmul.mubr.f32.gmra.mrb[0].mxu0 %v156
    %v227 = vpop.f32.mrb[0].mxu0
    %v228 = vadd.f32 %v153, %v227
    %v229 = vpop.f32.mrb[0].mxu0
    %230 = vmatprep.mubr.f32.mxu0 0.0
    %231 = vmatmul.mubr.f32.gmra.mrb[0].mxu0 %v159
    %v232 = vpop.f32.mrb[0].mxu0
    %v233 = vadd.f32 %v153, %v232
    %v234 = vpop.f32.mrb[0].mxu0
    %235 = vdwg.mxu0
    %s236 = scalar_lea.vmem %s4, 64
    %v237 = vld [vmem:[%s236] sm:$0xff]
    %v238 = vld [vmem:[%s236 + $0x8] sm:$0xff]
    %v239 = vld [vmem:[%s236 + $0x10] sm:$0xff]
    %v240 = vld [vmem:[%s236 + $0x18] sm:$0xff]
    %v241 = vld [vmem:[%s9 + $0x2] sm:$0x1]
    %v242 = vlaneseq
    %v243 = vshrl.u32 %v242, 7
    %v244 = vsub.s32 0, %v243
    %v245 = vrot.slane %v241, %v244
    %246 = vmatprep.subr.mxu0 0.0
    %247 = vmatpush1.msra.mxu0 %v237
    %248 = vmatprep.subr.mxu0 0.0
    %249 = vmatpush1.msra.mxu0 %v238
    %250 = vmatprep.subr.mxu0 0.0
    %251 = vmatpush1.msra.mxu0 %v239
    %252 = vmatprep.subr.mxu0 0.0
    %253 = vmatpush1.msra.mxu0 %v240
    %254 = vmatprep.subr.mxu0 0.0
    %255 = vmatpush1.msra.mxu0 0.0
    %256 = vmatprep.subr.mxu0 0.0
    %257 = vmatpush1.msra.mxu0 0.0
    %258 = vmatprep.subr.mxu0 0.0
    %259 = vmatpush1.msra.mxu0 0.0
    %260 = vmatprep.subr.mxu0 0.0
    %261 = vmatpush1.msra.mxu0 0.0
    %262 = vmatprep.subr.mxu0 0.0
    %263 = vmatpush1.msra.mxu0 0.0
    %264 = vmatprep.subr.mxu0 0.0
    %265 = vmatpush1.msra.mxu0 0.0
    %266 = vmatprep.subr.mxu0 0.0
    %267 = vmatpush1.msra.mxu0 0.0
    %268 = vmatprep.subr.mxu0 0.0
    %269 = vmatpush1.msra.mxu0 0.0
    %270 = vmatprep.subr.mxu0 0.0
    %271 = vmatpush1.msra.mxu0 0.0
    %272 = vmatprep.subr.mxu0 0.0
    %273 = vmatpush1.msra.mxu0 0.0
    %274 = vmatprep.subr.mxu0 0.0
    %275 = vmatpush1.msra.mxu0 0.0
    %276 = vmatprep.subr.mxu0 0.0
    %277 = vmatpush1.msra.mxu0 0.0
    %278 = vmatprep.subr.mxu0 0.0
    %279 = vmatpush1.msra.mxu0 0.0
    %280 = vmatprep.subr.mxu0 0.0
    %281 = vmatpush1.msra.mxu0 0.0
    %282 = vmatprep.subr.mxu0 0.0
    %283 = vmatpush1.msra.mxu0 0.0
    %284 = vmatprep.subr.mxu0 0.0
    %285 = vmatpush1.msra.mxu0 0.0
    %286 = vmatprep.subr.mxu0 0.0
    %287 = vmatpush1.msra.mxu0 0.0
    %288 = vmatprep.subr.mxu0 0.0
    %289 = vmatpush1.msra.mxu0 0.0
    %290 = vmatprep.subr.mxu0 0.0
    %291 = vmatpush1.msra.mxu0 0.0
    %292 = vmatprep.subr.mxu0 0.0
    %293 = vmatpush1.msra.mxu0 0.0
    %294 = vmatprep.subr.mxu0 0.0
    %295 = vmatpush1.msra.mxu0 0.0
    %296 = vmatprep.subr.mxu0 0.0
    %297 = vmatpush1.msra.mxu0 0.0
    %298 = vmatprep.subr.mxu0 0.0
    %299 = vmatpush1.msra.mxu0 0.0
    %300 = vmatprep.subr.mxu0 0.0
    %301 = vmatpush1.msra.mxu0 0.0
    %302 = vmatprep.subr.mxu0 0.0
    %303 = vmatpush1.msra.mxu0 0.0
    %304 = vmatprep.subr.mxu0 0.0
    %305 = vmatpush1.msra.mxu0 0.0
    %306 = vmatprep.subr.mxu0 0.0
    %307 = vmatpush1.msra.mxu0 0.0
    %308 = vmatprep.subr.mxu0 0.0
    %309 = vmatpush1.msra.mxu0 0.0
    %310 = vmatprep.mubr.f32.mxu0 0.0
    %311 = vmatmul.mubr.f32.gmra.mrb[0].mxu0 %v156
    %v312 = vpop.f32.mrb[0].mxu0
    %v313 = vadd.f32 %v245, %v312
    %v314 = vpop.f32.mrb[0].mxu0
    %315 = vmatprep.mubr.f32.mxu0 0.0
    %316 = vmatmul.mubr.f32.gmra.mrb[0].mxu0 %v159
    %v317 = vpop.f32.mrb[0].mxu0
    %v318 = vadd.f32 %v245, %v317
    %v319 = vpop.f32.mrb[0].mxu0
    %320 = vdwg.mxu0
    %s321 = scalar_lea.vmem %s4, 128
    %v322 = vld [vmem:[%s321] sm:$0xff]
    %v323 = vld [vmem:[%s321 + $0x8] sm:$0xff]
    %v324 = vld [vmem:[%s321 + $0x10] sm:$0xff]
    %v325 = vld [vmem:[%s321 + $0x18] sm:$0xff]
    %v326 = vld [vmem:[%s9 + $0x4] sm:$0x1]
    %v327 = vlaneseq
    %v328 = vshrl.u32 %v327, 7
    %v329 = vsub.s32 0, %v328
    %v330 = vrot.slane %v326, %v329
    %331 = vmatprep.subr.mxu0 0.0
    %332 = vmatpush1.msra.mxu0 %v322
    %333 = vmatprep.subr.mxu0 0.0
    %334 = vmatpush1.msra.mxu0 %v323
    %335 = vmatprep.subr.mxu0 0.0
    %336 = vmatpush1.msra.mxu0 %v324
    %337 = vmatprep.subr.mxu0 0.0
    %338 = vmatpush1.msra.mxu0 %v325
    %339 = vmatprep.subr.mxu0 0.0
    %340 = vmatpush1.msra.mxu0 0.0
    %341 = vmatprep.subr.mxu0 0.0
    %342 = vmatpush1.msra.mxu0 0.0
    %343 = vmatprep.subr.mxu0 0.0
    %344 = vmatpush1.msra.mxu0 0.0
    %345 = vmatprep.subr.mxu0 0.0
    %346 = vmatpush1.msra.mxu0 0.0
    %347 = vmatprep.subr.mxu0 0.0
    %348 = vmatpush1.msra.mxu0 0.0
    %349 = vmatprep.subr.mxu0 0.0
    %350 = vmatpush1.msra.mxu0 0.0
    %351 = vmatprep.subr.mxu0 0.0
    %352 = vmatpush1.msra.mxu0 0.0
    %353 = vmatprep.subr.mxu0 0.0
    %354 = vmatpush1.msra.mxu0 0.0
    %355 = vmatprep.subr.mxu0 0.0
    %356 = vmatpush1.msra.mxu0 0.0
    %357 = vmatprep.subr.mxu0 0.0
    %358 = vmatpush1.msra.mxu0 0.0
    %359 = vmatprep.subr.mxu0 0.0
    %360 = vmatpush1.msra.mxu0 0.0
    %361 = vmatprep.subr.mxu0 0.0
    %362 = vmatpush1.msra.mxu0 0.0
    %363 = vmatprep.subr.mxu0 0.0
    %364 = vmatpush1.msra.mxu0 0.0
    %365 = vmatprep.subr.mxu0 0.0
    %366 = vmatpush1.msra.mxu0 0.0
    %367 = vmatprep.subr.mxu0 0.0
    %368 = vmatpush1.msra.mxu0 0.0
    %369 = vmatprep.subr.mxu0 0.0
    %370 = vmatpush1.msra.mxu0 0.0
    %371 = vmatprep.subr.mxu0 0.0
    %372 = vmatpush1.msra.mxu0 0.0
    %373 = vmatprep.subr.mxu0 0.0
    %374 = vmatpush1.msra.mxu0 0.0
    %375 = vmatprep.subr.mxu0 0.0
    %376 = vmatpush1.msra.mxu0 0.0
    %377 = vmatprep.subr.mxu0 0.0
    %378 = vmatpush1.msra.mxu0 0.0
    %379 = vmatprep.subr.mxu0 0.0
    %380 = vmatpush1.msra.mxu0 0.0
    %381 = vmatprep.subr.mxu0 0.0
    %382 = vmatpush1.msra.mxu0 0.0
    %383 = vmatprep.subr.mxu0 0.0
    %384 = vmatpush1.msra.mxu0 0.0
    %385 = vmatprep.subr.mxu0 0.0
    %386 = vmatpush1.msra.mxu0 0.0
    %387 = vmatprep.subr.mxu0 0.0
    %388 = vmatpush1.msra.mxu0 0.0
    %389 = vmatprep.subr.mxu0 0.0
    %390 = vmatpush1.msra.mxu0 0.0
    %391 = vmatprep.subr.mxu0 0.0
    %392 = vmatpush1.msra.mxu0 0.0
    %393 = vmatprep.subr.mxu0 0.0
    %394 = vmatpush1.msra.mxu0 0.0
    %395 = vmatprep.mubr.f32.mxu0 0.0
    %396 = vmatmul.mubr.f32.gmra.mrb[0].mxu0 %v156
    %v397 = vpop.f32.mrb[0].mxu0
    %v398 = vadd.f32 %v330, %v397
    %v399 = vpop.f32.mrb[0].mxu0
    %400 = vmatprep.mubr.f32.mxu0 0.0
    %401 = vmatmul.mubr.f32.gmra.mrb[0].mxu0 %v159
    %v402 = vpop.f32.mrb[0].mxu0
    %v403 = vadd.f32 %v330, %v402
    %v404 = vpop.f32.mrb[0].mxu0
    %405 = vdwg.mxu0
    %s406 = scalar_lea.vmem %s4, 32
    %v407 = vld [vmem:[%s406] sm:$0xff]
    %v408 = vld [vmem:[%s406 + $0x8] sm:$0xff]
    %v409 = vld [vmem:[%s406 + $0x10] sm:$0xff]
    %v410 = vld [vmem:[%s406 + $0x18] sm:$0xff]
    %v411 = vld [vmem:[%s9 + $0x1] sm:$0x1]
    %v412 = vlaneseq
    %v413 = vshrl.u32 %v412, 7
    %v414 = vsub.s32 0, %v413
    %v415 = vrot.slane %v411, %v414
    %416 = vmatprep.subr.mxu0 0.0
    %417 = vmatpush1.msra.mxu0 %v407
    %418 = vmatprep.subr.mxu0 0.0
    %419 = vmatpush1.msra.mxu0 %v408
    %420 = vmatprep.subr.mxu0 0.0
    %421 = vmatpush1.msra.mxu0 %v409
    %422 = vmatprep.subr.mxu0 0.0
    %423 = vmatpush1.msra.mxu0 %v410
    %424 = vmatprep.subr.mxu0 0.0
    %425 = vmatpush1.msra.mxu0 0.0
    %426 = vmatprep.subr.mxu0 0.0
    %427 = vmatpush1.msra.mxu0 0.0
    %428 = vmatprep.subr.mxu0 0.0
    %429 = vmatpush1.msra.mxu0 0.0
    %430 = vmatprep.subr.mxu0 0.0
    %431 = vmatpush1.msra.mxu0 0.0
    %432 = vmatprep.subr.mxu0 0.0
    %433 = vmatpush1.msra.mxu0 0.0
    %434 = vmatprep.subr.mxu0 0.0
    %435 = vmatpush1.msra.mxu0 0.0
    %436 = vmatprep.subr.mxu0 0.0
    %437 = vmatpush1.msra.mxu0 0.0
    %438 = vmatprep.subr.mxu0 0.0
    %439 = vmatpush1.msra.mxu0 0.0
    %440 = vmatprep.subr.mxu0 0.0
    %441 = vmatpush1.msra.mxu0 0.0
    %442 = vmatprep.subr.mxu0 0.0
    %443 = vmatpush1.msra.mxu0 0.0
    %444 = vmatprep.subr.mxu0 0.0
    %445 = vmatpush1.msra.mxu0 0.0
    %446 = vmatprep.subr.mxu0 0.0
    %447 = vmatpush1.msra.mxu0 0.0
    %448 = vmatprep.subr.mxu0 0.0
    %449 = vmatpush1.msra.mxu0 0.0
    %450 = vmatprep.subr.mxu0 0.0
    %451 = vmatpush1.msra.mxu0 0.0
    %452 = vmatprep.subr.mxu0 0.0
    %453 = vmatpush1.msra.mxu0 0.0
    %454 = vmatprep.subr.mxu0 0.0
    %455 = vmatpush1.msra.mxu0 0.0
    %456 = vmatprep.subr.mxu0 0.0
    %457 = vmatpush1.msra.mxu0 0.0
    %458 = vmatprep.subr.mxu0 0.0
    %459 = vmatpush1.msra.mxu0 0.0
    %460 = vmatprep.subr.mxu0 0.0
    %461 = vmatpush1.msra.mxu0 0.0
    %462 = vmatprep.subr.mxu0 0.0
    %463 = vmatpush1.msra.mxu0 0.0
    %464 = vmatprep.subr.mxu0 0.0
    %465 = vmatpush1.msra.mxu0 0.0
    %466 = vmatprep.subr.mxu0 0.0
    %467 = vmatpush1.msra.mxu0 0.0
    %468 = vmatprep.subr.mxu0 0.0
    %469 = vmatpush1.msra.mxu0 0.0
    %470 = vmatprep.subr.mxu0 0.0
    %471 = vmatpush1.msra.mxu0 0.0
    %472 = vmatprep.subr.mxu0 0.0
    %473 = vmatpush1.msra.mxu0 0.0
    %474 = vmatprep.subr.mxu0 0.0
    %475 = vmatpush1.msra.mxu0 0.0
    %476 = vmatprep.subr.mxu0 0.0
    %477 = vmatpush1.msra.mxu0 0.0
    %478 = vmatprep.subr.mxu0 0.0
    %479 = vmatpush1.msra.mxu0 0.0
    %480 = vmatprep.mubr.f32.mxu0 0.0
    %481 = vmatmul.mubr.f32.gmra.mrb[0].mxu0 %v156
    %v482 = vpop.f32.mrb[0].mxu0
    %v483 = vadd.f32 %v415, %v482
    %v484 = vpop.f32.mrb[0].mxu0
    %485 = vmatprep.mubr.f32.mxu0 0.0
    %486 = vmatmul.mubr.f32.gmra.mrb[0].mxu0 %v159
    %v487 = vpop.f32.mrb[0].mxu0
    %v488 = vadd.f32 %v415, %v487
    %v489 = vpop.f32.mrb[0].mxu0
    %490 = vdwg.mxu0
    %s491 = scalar_lea.vmem %s4, 96
    %v492 = vld [vmem:[%s491] sm:$0xff]
    %v493 = vld [vmem:[%s491 + $0x8] sm:$0xff]
    %v494 = vld [vmem:[%s491 + $0x10] sm:$0xff]
    %v495 = vld [vmem:[%s491 + $0x18] sm:$0xff]
    %v496 = vld [vmem:[%s9 + $0x3] sm:$0x1]
    %v497 = vlaneseq
    %v498 = vshrl.u32 %v497, 7
    %v499 = vsub.s32 0, %v498
    %v500 = vrot.slane %v496, %v499
    %501 = vmatprep.subr.mxu0 0.0
    %502 = vmatpush1.msra.mxu0 %v492
    %503 = vmatprep.subr.mxu0 0.0
    %504 = vmatpush1.msra.mxu0 %v493
    %505 = vmatprep.subr.mxu0 0.0
    %506 = vmatpush1.msra.mxu0 %v494
    %507 = vmatprep.subr.mxu0 0.0
    %508 = vmatpush1.msra.mxu0 %v495
    %509 = vmatprep.subr.mxu0 0.0
    %510 = vmatpush1.msra.mxu0 0.0
    %511 = vmatprep.subr.mxu0 0.0
    %512 = vmatpush1.msra.mxu0 0.0
    %513 = vmatprep.subr.mxu0 0.0
    %514 = vmatpush1.msra.mxu0 0.0
    %515 = vmatprep.subr.mxu0 0.0
    %516 = vmatpush1.msra.mxu0 0.0
    %517 = vmatprep.subr.mxu0 0.0
    %518 = vmatpush1.msra.mxu0 0.0
    %519 = vmatprep.subr.mxu0 0.0
    %520 = vmatpush1.msra.mxu0 0.0
    %521 = vmatprep.subr.mxu0 0.0
    %522 = vmatpush1.msra.mxu0 0.0
    %523 = vmatprep.subr.mxu0 0.0
    %524 = vmatpush1.msra.mxu0 0.0
    %525 = vmatprep.subr.mxu0 0.0
    %526 = vmatpush1.msra.mxu0 0.0
    %527 = vmatprep.subr.mxu0 0.0
    %528 = vmatpush1.msra.mxu0 0.0
    %529 = vmatprep.subr.mxu0 0.0
    %530 = vmatpush1.msra.mxu0 0.0
    %531 = vmatprep.subr.mxu0 0.0
    %532 = vmatpush1.msra.mxu0 0.0
    %533 = vmatprep.subr.mxu0 0.0
    %534 = vmatpush1.msra.mxu0 0.0
    %535 = vmatprep.subr.mxu0 0.0
    %536 = vmatpush1.msra.mxu0 0.0
    %537 = vmatprep.subr.mxu0 0.0
    %538 = vmatpush1.msra.mxu0 0.0
    %539 = vmatprep.subr.mxu0 0.0
    %540 = vmatpush1.msra.mxu0 0.0
    %541 = vmatprep.subr.mxu0 0.0
    %542 = vmatpush1.msra.mxu0 0.0
    %543 = vmatprep.subr.mxu0 0.0
    %544 = vmatpush1.msra.mxu0 0.0
    %545 = vmatprep.subr.mxu0 0.0
    %546 = vmatpush1.msra.mxu0 0.0
    %547 = vmatprep.subr.mxu0 0.0
    %548 = vmatpush1.msra.mxu0 0.0
    %549 = vmatprep.subr.mxu0 0.0
    %550 = vmatpush1.msra.mxu0 0.0
    %551 = vmatprep.subr.mxu0 0.0
    %552 = vmatpush1.msra.mxu0 0.0
    %553 = vmatprep.subr.mxu0 0.0
    %554 = vmatpush1.msra.mxu0 0.0
    %555 = vmatprep.subr.mxu0 0.0
    %556 = vmatpush1.msra.mxu0 0.0
    %557 = vmatprep.subr.mxu0 0.0
    %558 = vmatpush1.msra.mxu0 0.0
    %559 = vmatprep.subr.mxu0 0.0
    %560 = vmatpush1.msra.mxu0 0.0
    %561 = vmatprep.subr.mxu0 0.0
    %562 = vmatpush1.msra.mxu0 0.0
    %563 = vmatprep.subr.mxu0 0.0
    %564 = vmatpush1.msra.mxu0 0.0
    %565 = vmatprep.mubr.f32.mxu0 0.0
    %566 = vmatmul.mubr.f32.gmra.mrb[0].mxu0 %v156
    %v567 = vpop.f32.mrb[0].mxu0
    %v568 = vadd.f32 %v500, %v567
    %v569 = vpop.f32.mrb[0].mxu0
    %570 = vmatprep.mubr.f32.mxu0 0.0
    %571 = vmatmul.mubr.f32.gmra.mrb[0].mxu0 %v159
    %v572 = vpop.f32.mrb[0].mxu0
    %v573 = vadd.f32 %v500, %v572
    %v574 = vpop.f32.mrb[0].mxu0
    %575 = vdwg.mxu0
    %s576 = scalar_lea.vmem %s4, 160
    %v577 = vld [vmem:[%s576] sm:$0xff]
    %v578 = vld [vmem:[%s576 + $0x8] sm:$0xff]
    %v579 = vld [vmem:[%s576 + $0x10] sm:$0xff]
    %v580 = vld [vmem:[%s576 + $0x18] sm:$0xff]
    %v581 = vld [vmem:[%s9 + $0x5] sm:$0x1]
    %v582 = vlaneseq
    %v583 = vshrl.u32 %v582, 7
    %v584 = vsub.s32 0, %v583
    %v585 = vrot.slane %v581, %v584
    %586 = vmatprep.subr.mxu0 0.0
    %587 = vmatpush1.msra.mxu0 %v577
    %588 = vmatprep.subr.mxu0 0.0
    %589 = vmatpush1.msra.mxu0 %v578
    %590 = vmatprep.subr.mxu0 0.0
    %591 = vmatpush1.msra.mxu0 %v579
    %592 = vmatprep.subr.mxu0 0.0
    %593 = vmatpush1.msra.mxu0 %v580
    %594 = vmatprep.subr.mxu0 0.0
    %595 = vmatpush1.msra.mxu0 0.0
    %596 = vmatprep.subr.mxu0 0.0
    %597 = vmatpush1.msra.mxu0 0.0
    %598 = vmatprep.subr.mxu0 0.0
    %599 = vmatpush1.msra.mxu0 0.0
    %600 = vmatprep.subr.mxu0 0.0
    %601 = vmatpush1.msra.mxu0 0.0
    %602 = vmatprep.subr.mxu0 0.0
    %603 = vmatpush1.msra.mxu0 0.0
    %604 = vmatprep.subr.mxu0 0.0
    %605 = vmatpush1.msra.mxu0 0.0
    %606 = vmatprep.subr.mxu0 0.0
    %607 = vmatpush1.msra.mxu0 0.0
    %608 = vmatprep.subr.mxu0 0.0
    %609 = vmatpush1.msra.mxu0 0.0
    %610 = vmatprep.subr.mxu0 0.0
    %611 = vmatpush1.msra.mxu0 0.0
    %612 = vmatprep.subr.mxu0 0.0
    %613 = vmatpush1.msra.mxu0 0.0
    %614 = vmatprep.subr.mxu0 0.0
    %615 = vmatpush1.msra.mxu0 0.0
    %616 = vmatprep.subr.mxu0 0.0
    %617 = vmatpush1.msra.mxu0 0.0
    %618 = vmatprep.subr.mxu0 0.0
    %619 = vmatpush1.msra.mxu0 0.0
    %620 = vmatprep.subr.mxu0 0.0
    %621 = vmatpush1.msra.mxu0 0.0
    %622 = vmatprep.subr.mxu0 0.0
    %623 = vmatpush1.msra.mxu0 0.0
    %624 = vmatprep.subr.mxu0 0.0
    %625 = vmatpush1.msra.mxu0 0.0
    %626 = vmatprep.subr.mxu0 0.0
    %627 = vmatpush1.msra.mxu0 0.0
    %628 = vmatprep.subr.mxu0 0.0
    %629 = vmatpush1.msra.mxu0 0.0
    %630 = vmatprep.subr.mxu0 0.0
    %631 = vmatpush1.msra.mxu0 0.0
    %632 = vmatprep.subr.mxu0 0.0
    %633 = vmatpush1.msra.mxu0 0.0
    %634 = vmatprep.subr.mxu0 0.0
    %635 = vmatpush1.msra.mxu0 0.0
    %636 = vmatprep.subr.mxu0 0.0
    %637 = vmatpush1.msra.mxu0 0.0
    %638 = vmatprep.subr.mxu0 0.0
    %639 = vmatpush1.msra.mxu0 0.0
    %640 = vmatprep.subr.mxu0 0.0
    %641 = vmatpush1.msra.mxu0 0.0
    %642 = vmatprep.subr.mxu0 0.0
    %643 = vmatpush1.msra.mxu0 0.0
    %644 = vmatprep.subr.mxu0 0.0
    %645 = vmatpush1.msra.mxu0 0.0
    %646 = vmatprep.subr.mxu0 0.0
    %647 = vmatpush1.msra.mxu0 0.0
    %648 = vmatprep.subr.mxu0 0.0
    %649 = vmatpush1.msra.mxu0 0.0
    %650 = vmatprep.mubr.f32.mxu0 0.0
    %651 = vmatmul.mubr.f32.gmra.mrb[0].mxu0 %v156
    %v652 = vpop.f32.mrb[0].mxu0
    %v653 = vadd.f32 %v585, %v652
    %v654 = vpop.f32.mrb[0].mxu0
    %655 = vmatprep.mubr.f32.mxu0 0.0
    %656 = vmatmul.mubr.f32.gmra.mrb[0].mxu0 %v159
    %v657 = vpop.f32.mrb[0].mxu0
    %v658 = vadd.f32 %v585, %v657
    %v659 = vpop.f32.mrb[0].mxu0
    %660 = vdwg.mxu0
    %v661 = vld [vmem:[%s2] sm:$0xff]
    %vm662 = vcmask 130048
    %v664 = vsel %vm662, %v228, 0
    %v667 = vsel %vm662, %v313, 0
    %669 = vmatprep.subr.mxu0 0.0
    %670 = vmatpush1.xpose.msra.mxu0 %v667
    %671 = vmatprep.subr.mxu0 0.0
    %672 = vmatpush1.xpose.msra.mxu0 0.0
    %673 = vmatprep.subr.mxu0 0.0
    %674 = vmatpush1.xpose.msra.mxu0 0.0
    %675 = vmatprep.subr.mxu0 0.0
    %676 = vmatpush1.xpose.msra.mxu0 0.0
    %677 = vmatprep.subr.mxu0 0.0
    %678 = vmatpush1.xpose.msra.mxu0 0.0
    %679 = vmatprep.subr.mxu0 0.0
    %680 = vmatpush1.xpose.msra.mxu0 0.0
    %681 = vmatprep.subr.mxu0 0.0
    %682 = vmatpush1.xpose.msra.mxu0 0.0
    %683 = vmatprep.subr.mxu0 0.0
    %684 = vmatpush1.xpose.msra.mxu0 0.0
    %685 = vmatprep.subr.mxu0 0.0
    %686 = vmatpush1.xpose.msra.mxu0 0.0
    %687 = vmatprep.subr.mxu0 0.0
    %688 = vmatpush1.xpose.msra.mxu0 0.0
    %689 = vmatprep.subr.mxu0 0.0
    %690 = vmatpush1.xpose.msra.mxu0 0.0
    %691 = vmatprep.subr.mxu0 0.0
    %692 = vmatpush1.xpose.msra.mxu0 0.0
    %693 = vmatprep.subr.mxu0 0.0
    %694 = vmatpush1.xpose.msra.mxu0 0.0
    %695 = vmatprep.subr.mxu0 0.0
    %696 = vmatpush1.xpose.msra.mxu0 0.0
    %697 = vmatprep.subr.mxu0 0.0
    %698 = vmatpush1.xpose.msra.mxu0 0.0
    %699 = vmatprep.subr.mxu0 0.0
    %700 = vmatpush1.xpose.msra.mxu0 0.0
    %701 = vmatprep.subr.mxu0 0.0
    %702 = vmatpush1.xpose.msra.mxu0 0.0
    %703 = vmatprep.subr.mxu0 0.0
    %704 = vmatpush1.xpose.msra.mxu0 0.0
    %705 = vmatprep.subr.mxu0 0.0
    %706 = vmatpush1.xpose.msra.mxu0 0.0
    %707 = vmatprep.subr.mxu0 0.0
    %708 = vmatpush1.xpose.msra.mxu0 0.0
    %709 = vmatprep.subr.mxu0 0.0
    %710 = vmatpush1.xpose.msra.mxu0 0.0
    %711 = vmatprep.subr.mxu0 0.0
    %712 = vmatpush1.xpose.msra.mxu0 0.0
    %713 = vmatprep.subr.mxu0 0.0
    %714 = vmatpush1.xpose.msra.mxu0 0.0
    %715 = vmatprep.subr.mxu0 0.0
    %716 = vmatpush1.xpose.msra.mxu0 0.0
    %717 = vmatprep.subr.mxu0 0.0
    %718 = vmatpush1.xpose.msra.mxu0 0.0
    %719 = vmatprep.subr.mxu0 0.0
    %720 = vmatpush1.xpose.msra.mxu0 0.0
    %721 = vmatprep.subr.mxu0 0.0
    %722 = vmatpush1.xpose.msra.mxu0 0.0
    %723 = vmatprep.subr.mxu0 0.0
    %724 = vmatpush1.xpose.msra.mxu0 0.0
    %725 = vmatprep.subr.mxu0 0.0
    %726 = vmatpush1.xpose.msra.mxu0 0.0
    %727 = vmatprep.subr.mxu0 0.0
    %728 = vmatpush1.xpose.msra.mxu0 0.0
    %729 = vmatprep.subr.mxu0 0.0
    %730 = vmatpush1.xpose.msra.mxu0 0.0
    %731 = vmatprep.subr.mxu0 0.0
    %732 = vmatpush1.xpose.msra.mxu0 0.0
    %733 = vmatprep.mubr.f32.mxu0 0.0
    %734 = vmatmul.mubr.f32.gmra.mrb[0].mxu0 %v664
    %v735 = vpop.f32.mrb[0].mxu0
    %v736 = vadd.f32 %v661, %v735
    %v737 = vpop.f32.mrb[0].mxu0
    %738 = vdwg.mxu0
    %vm739 = vcmask 64512
    %v740 = vsel %vm739, %v736, -inf
    %741 = vmax.xlane.f32.xlu0 %v740
    %v742 = vpop.xlane.xlu0 %741
    %v743 = vsub.f32 %v736, %v742
    %v744 = vmul.f32 %v743, 1.442695
    %v745 = vpow.pop %v744
    %v746 = vsel %vm739, %v745, 0.0
    %747 = vadd.xlane.f32.xlu0 %v746
    %v748 = vpop.xlane.xlu0 %747
    %v749 = vrcp.pop %v748
    %v750 = vmul.f32 %v745, %v749
    %v752 = vsel %vm739, %v750, 0
    %754 = vmatprep.subr.mxu0 0.0
    %755 = vmatpush1.msra.mxu0 %v398
    %756 = vmatprep.subr.mxu0 0.0
    %757 = vmatpush1.msra.mxu0 0.0
    %758 = vmatprep.subr.mxu0 0.0
    %759 = vmatpush1.msra.mxu0 0.0
    %760 = vmatprep.subr.mxu0 0.0
    %761 = vmatpush1.msra.mxu0 0.0
    %762 = vmatprep.subr.mxu0 0.0
    %763 = vmatpush1.msra.mxu0 0.0
    %764 = vmatprep.subr.mxu0 0.0
    %765 = vmatpush1.msra.mxu0 0.0
    %766 = vmatprep.subr.mxu0 0.0
    %767 = vmatpush1.msra.mxu0 0.0
    %768 = vmatprep.subr.mxu0 0.0
    %769 = vmatpush1.msra.mxu0 0.0
    %770 = vmatprep.subr.mxu0 0.0
    %771 = vmatpush1.msra.mxu0 0.0
    %772 = vmatprep.subr.mxu0 0.0
    %773 = vmatpush1.msra.mxu0 0.0
    %774 = vmatprep.subr.mxu0 0.0
    %775 = vmatpush1.msra.mxu0 0.0
    %776 = vmatprep.subr.mxu0 0.0
    %777 = vmatpush1.msra.mxu0 0.0
    %778 = vmatprep.subr.mxu0 0.0
    %779 = vmatpush1.msra.mxu0 0.0
    %780 = vmatprep.subr.mxu0 0.0
    %781 = vmatpush1.msra.mxu0 0.0
    %782 = vmatprep.subr.mxu0 0.0
    %783 = vmatpush1.msra.mxu0 0.0
    %784 = vmatprep.subr.mxu0 0.0
    %785 = vmatpush1.msra.mxu0 0.0
    %786 = vmatprep.subr.mxu0 0.0
    %787 = vmatpush1.msra.mxu0 0.0
    %788 = vmatprep.subr.mxu0 0.0
    %789 = vmatpush1.msra.mxu0 0.0
    %790 = vmatprep.subr.mxu0 0.0
    %791 = vmatpush1.msra.mxu0 0.0
    %792 = vmatprep.subr.mxu0 0.0
    %793 = vmatpush1.msra.mxu0 0.0
    %794 = vmatprep.subr.mxu0 0.0
    %795 = vmatpush1.msra.mxu0 0.0
    %796 = vmatprep.subr.mxu0 0.0
    %797 = vmatpush1.msra.mxu0 0.0
    %798 = vmatprep.subr.mxu0 0.0
    %799 = vmatpush1.msra.mxu0 0.0
    %800 = vmatprep.subr.mxu0 0.0
    %801 = vmatpush1.msra.mxu0 0.0
    %802 = vmatprep.subr.mxu0 0.0
    %803 = vmatpush1.msra.mxu0 0.0
    %804 = vmatprep.subr.mxu0 0.0
    %805 = vmatpush1.msra.mxu0 0.0
    %806 = vmatprep.subr.mxu0 0.0
    %807 = vmatpush1.msra.mxu0 0.0
    %808 = vmatprep.subr.mxu0 0.0
    %809 = vmatpush1.msra.mxu0 0.0
    %810 = vmatprep.subr.mxu0 0.0
    %811 = vmatpush1.msra.mxu0 0.0
    %812 = vmatprep.subr.mxu0 0.0
    %813 = vmatpush1.msra.mxu0 0.0
    %814 = vmatprep.subr.mxu0 0.0
    %815 = vmatpush1.msra.mxu0 0.0
    %816 = vmatprep.subr.mxu0 0.0
    %817 = vmatpush1.msra.mxu0 0.0
    %818 = vmatprep.mubr.f32.mxu0 0.0
    %819 = vmatmul.mubr.f32.gmra.mrb[0].mxu0 %v752
    %v820 = vpop.f32.mrb[0].mxu0
    %v821 = vadd.f32 0.0, %v820
    %v822 = vpop.f32.mrb[0].mxu0
    %823 = vdwg.mxu0
    %v824 = vld [vmem:[%s5] sm:$0xff]
    %v825 = vld [vmem:[%s5 + $0x8] sm:$0xff]
    %v827 = vsel %vm662, %v483, 0
    %v830 = vsel %vm662, %v568, 0
    %832 = vmatprep.subr.mxu0 0.0
    %833 = vmatpush1.xpose.msra.mxu0 %v830
    %834 = vmatprep.subr.mxu0 0.0
    %835 = vmatpush1.xpose.msra.mxu0 0.0
    %836 = vmatprep.subr.mxu0 0.0
    %837 = vmatpush1.xpose.msra.mxu0 0.0
    %838 = vmatprep.subr.mxu0 0.0
    %839 = vmatpush1.xpose.msra.mxu0 0.0
    %840 = vmatprep.subr.mxu0 0.0
    %841 = vmatpush1.xpose.msra.mxu0 0.0
    %842 = vmatprep.subr.mxu0 0.0
    %843 = vmatpush1.xpose.msra.mxu0 0.0
    %844 = vmatprep.subr.mxu0 0.0
    %845 = vmatpush1.xpose.msra.mxu0 0.0
    %846 = vmatprep.subr.mxu0 0.0
    %847 = vmatpush1.xpose.msra.mxu0 0.0
    %848 = vmatprep.subr.mxu0 0.0
    %849 = vmatpush1.xpose.msra.mxu0 0.0
    %850 = vmatprep.subr.mxu0 0.0
    %851 = vmatpush1.xpose.msra.mxu0 0.0
    %852 = vmatprep.subr.mxu0 0.0
    %853 = vmatpush1.xpose.msra.mxu0 0.0
    %854 = vmatprep.subr.mxu0 0.0
    %855 = vmatpush1.xpose.msra.mxu0 0.0
    %856 = vmatprep.subr.mxu0 0.0
    %857 = vmatpush1.xpose.msra.mxu0 0.0
    %858 = vmatprep.subr.mxu0 0.0
    %859 = vmatpush1.xpose.msra.mxu0 0.0
    %860 = vmatprep.subr.mxu0 0.0
    %861 = vmatpush1.xpose.msra.mxu0 0.0
    %862 = vmatprep.subr.mxu0 0.0
    %863 = vmatpush1.xpose.msra.mxu0 0.0
    %864 = vmatprep.subr.mxu0 0.0
    %865 = vmatpush1.xpose.msra.mxu0 0.0
    %866 = vmatprep.subr.mxu0 0.0
    %867 = vmatpush1.xpose.msra.mxu0 0.0
    %868 = vmatprep.subr.mxu0 0.0
    %869 = vmatpush1.xpose.msra.mxu0 0.0
    %870 = vmatprep.subr.mxu0 0.0
    %871 = vmatpush1.xpose.msra.mxu0 0.0
    %872 = vmatprep.subr.mxu0 0.0
    %873 = vmatpush1.xpose.msra.mxu0 0.0
    %874 = vmatprep.subr.mxu0 0.0
    %875 = vmatpush1.xpose.msra.mxu0 0.0
    %876 = vmatprep.subr.mxu0 0.0
    %877 = vmatpush1.xpose.msra.mxu0 0.0
    %878 = vmatprep.subr.mxu0 0.0
    %879 = vmatpush1.xpose.msra.mxu0 0.0
    %880 = vmatprep.subr.mxu0 0.0
    %881 = vmatpush1.xpose.msra.mxu0 0.0
    %882 = vmatprep.subr.mxu0 0.0
    %883 = vmatpush1.xpose.msra.mxu0 0.0
    %884 = vmatprep.subr.mxu0 0.0
    %885 = vmatpush1.xpose.msra.mxu0 0.0
    %886 = vmatprep.subr.mxu0 0.0
    %887 = vmatpush1.xpose.msra.mxu0 0.0
    %888 = vmatprep.subr.mxu0 0.0
    %889 = vmatpush1.xpose.msra.mxu0 0.0
    %890 = vmatprep.subr.mxu0 0.0
    %891 = vmatpush1.xpose.msra.mxu0 0.0
    %892 = vmatprep.subr.mxu0 0.0
    %893 = vmatpush1.xpose.msra.mxu0 0.0
    %894 = vmatprep.subr.mxu0 0.0
    %895 = vmatpush1.xpose.msra.mxu0 0.0
    %896 = vmatprep.mubr.f32.mxu0 0.0
    %897 = vmatmul.mubr.f32.gmra.mrb[0].mxu0 %v827
    %v898 = vpop.f32.mrb[0].mxu0
    %v899 = vadd.f32 %v661, %v898
    %v900 = vpop.f32.mrb[0].mxu0
    %901 = vdwg.mxu0
    %v902 = vsel %vm739, %v899, -inf
    %903 = vmax.xlane.f32.xlu0 %v902
    %v904 = vpop.xlane.xlu0 %903
    %v905 = vsub.f32 %v899, %v904
    %v906 = vmul.f32 %v905, 1.442695
    %v907 = vpow.pop %v906
    %v908 = vsel %vm739, %v907, 0.0
    %909 = vadd.xlane.f32.xlu0 %v908
    %v910 = vpop.xlane.xlu0 %909
    %v911 = vrcp.pop %v910
    %v912 = vmul.f32 %v907, %v911
    %v914 = vsel %vm739, %v912, 0
    %916 = vmatprep.subr.mxu0 0.0
    %917 = vmatpush1.msra.mxu0 %v653
    %918 = vmatprep.subr.mxu0 0.0
    %919 = vmatpush1.msra.mxu0 0.0
    %920 = vmatprep.subr.mxu0 0.0
    %921 = vmatpush1.msra.mxu0 0.0
    %922 = vmatprep.subr.mxu0 0.0
    %923 = vmatpush1.msra.mxu0 0.0
    %924 = vmatprep.subr.mxu0 0.0
    %925 = vmatpush1.msra.mxu0 0.0
    %926 = vmatprep.subr.mxu0 0.0
    %927 = vmatpush1.msra.mxu0 0.0
    %928 = vmatprep.subr.mxu0 0.0
    %929 = vmatpush1.msra.mxu0 0.0
    %930 = vmatprep.subr.mxu0 0.0
    %931 = vmatpush1.msra.mxu0 0.0
    %932 = vmatprep.subr.mxu0 0.0
    %933 = vmatpush1.msra.mxu0 0.0
    %934 = vmatprep.subr.mxu0 0.0
    %935 = vmatpush1.msra.mxu0 0.0
    %936 = vmatprep.subr.mxu0 0.0
    %937 = vmatpush1.msra.mxu0 0.0
    %938 = vmatprep.subr.mxu0 0.0
    %939 = vmatpush1.msra.mxu0 0.0
    %940 = vmatprep.subr.mxu0 0.0
    %941 = vmatpush1.msra.mxu0 0.0
    %942 = vmatprep.subr.mxu0 0.0
    %943 = vmatpush1.msra.mxu0 0.0
    %944 = vmatprep.subr.mxu0 0.0
    %945 = vmatpush1.msra.mxu0 0.0
    %946 = vmatprep.subr.mxu0 0.0
    %947 = vmatpush1.msra.mxu0 0.0
    %948 = vmatprep.subr.mxu0 0.0
    %949 = vmatpush1.msra.mxu0 0.0
    %950 = vmatprep.subr.mxu0 0.0
    %951 = vmatpush1.msra.mxu0 0.0
    %952 = vmatprep.subr.mxu0 0.0
    %953 = vmatpush1.msra.mxu0 0.0
    %954 = vmatprep.subr.mxu0 0.0
    %955 = vmatpush1.msra.mxu0 0.0
    %956 = vmatprep.subr.mxu0 0.0
    %957 = vmatpush1.msra.mxu0 0.0
    %958 = vmatprep.subr.mxu0 0.0
    %959 = vmatpush1.msra.mxu0 0.0
    %960 = vmatprep.subr.mxu0 0.0
    %961 = vmatpush1.msra.mxu0 0.0
    %962 = vmatprep.subr.mxu0 0.0
    %963 = vmatpush1.msra.mxu0 0.0
    %964 = vmatprep.subr.mxu0 0.0
    %965 = vmatpush1.msra.mxu0 0.0
    %966 = vmatprep.subr.mxu0 0.0
    %967 = vmatpush1.msra.mxu0 0.0
    %968 = vmatprep.subr.mxu0 0.0
    %969 = vmatpush1.msra.mxu0 0.0
    %970 = vmatprep.subr.mxu0 0.0
    %971 = vmatpush1.msra.mxu0 0.0
    %972 = vmatprep.subr.mxu0 0.0
    %973 = vmatpush1.msra.mxu0 0.0
    %974 = vmatprep.subr.mxu0 0.0
    %975 = vmatpush1.msra.mxu0 0.0
    %976 = vmatprep.subr.mxu0 0.0
    %977 = vmatpush1.msra.mxu0 0.0
    %978 = vmatprep.subr.mxu0 0.0
    %979 = vmatpush1.msra.mxu0 0.0
    %980 = vmatprep.mubr.f32.mxu0 0.0
    %981 = vmatmul.mubr.f32.gmra.mrb[0].mxu0 %v914
    %v982 = vpop.f32.mrb[0].mxu0
    %v983 = vadd.f32 0.0, %v982
    %v984 = vpop.f32.mrb[0].mxu0
    %985 = vdwg.mxu0
    %v986 = vld [vmem:[%s5 + $0x10] sm:$0xff]
    %v987 = vld [vmem:[%s5 + $0x18] sm:$0xff]
    %v989 = vsel %vm662, %v983, 0
    %991 = vmatprep.subr.mxu0 0.0
    %992 = vmatpush1.msra.mxu0 %v986
    %993 = vmatprep.subr.mxu0 0.0
    %994 = vmatpush1.msra.mxu0 %v987
    %995 = vmatprep.subr.mxu0 0.0
    %996 = vmatpush1.msra.mxu0 0.0
    %997 = vmatprep.subr.mxu0 0.0
    %998 = vmatpush1.msra.mxu0 0.0
    %999 = vmatprep.subr.mxu0 0.0
    %1000 = vmatpush1.msra.mxu0 0.0
    %1001 = vmatprep.subr.mxu0 0.0
    %1002 = vmatpush1.msra.mxu0 0.0
    %1003 = vmatprep.subr.mxu0 0.0
    %1004 = vmatpush1.msra.mxu0 0.0
    %1005 = vmatprep.subr.mxu0 0.0
    %1006 = vmatpush1.msra.mxu0 0.0
    %1007 = vmatprep.subr.mxu0 0.0
    %1008 = vmatpush1.msra.mxu0 0.0
    %1009 = vmatprep.subr.mxu0 0.0
    %1010 = vmatpush1.msra.mxu0 0.0
    %1011 = vmatprep.subr.mxu0 0.0
    %1012 = vmatpush1.msra.mxu0 0.0
    %1013 = vmatprep.subr.mxu0 0.0
    %1014 = vmatpush1.msra.mxu0 0.0
    %1015 = vmatprep.subr.mxu0 0.0
    %1016 = vmatpush1.msra.mxu0 0.0
    %1017 = vmatprep.subr.mxu0 0.0
    %1018 = vmatpush1.msra.mxu0 0.0
    %1019 = vmatprep.subr.mxu0 0.0
    %1020 = vmatpush1.msra.mxu0 0.0
    %1021 = vmatprep.subr.mxu0 0.0
    %1022 = vmatpush1.msra.mxu0 0.0
    %1023 = vmatprep.subr.mxu0 0.0
    %1024 = vmatpush1.msra.mxu0 0.0
    %1025 = vmatprep.subr.mxu0 0.0
    %1026 = vmatpush1.msra.mxu0 0.0
    %1027 = vmatprep.subr.mxu0 0.0
    %1028 = vmatpush1.msra.mxu0 0.0
    %1029 = vmatprep.subr.mxu0 0.0
    %1030 = vmatpush1.msra.mxu0 0.0
    %1031 = vmatprep.subr.mxu0 0.0
    %1032 = vmatpush1.msra.mxu0 0.0
    %1033 = vmatprep.subr.mxu0 0.0
    %1034 = vmatpush1.msra.mxu0 0.0
    %1035 = vmatprep.subr.mxu0 0.0
    %1036 = vmatpush1.msra.mxu0 0.0
    %1037 = vmatprep.subr.mxu0 0.0
    %1038 = vmatpush1.msra.mxu0 0.0
    %1039 = vmatprep.subr.mxu0 0.0
    %1040 = vmatpush1.msra.mxu0 0.0
    %1041 = vmatprep.subr.mxu0 0.0
    %1042 = vmatpush1.msra.mxu0 0.0
    %1043 = vmatprep.subr.mxu0 0.0
    %1044 = vmatpush1.msra.mxu0 0.0
    %1045 = vmatprep.subr.mxu0 0.0
    %1046 = vmatpush1.msra.mxu0 0.0
    %1047 = vmatprep.subr.mxu0 0.0
    %1048 = vmatpush1.msra.mxu0 0.0
    %1049 = vmatprep.subr.mxu0 0.0
    %1050 = vmatpush1.msra.mxu0 0.0
    %1051 = vmatprep.subr.mxu0 0.0
    %1052 = vmatpush1.msra.mxu0 0.0
    %1053 = vmatprep.subr.mxu0 0.0
    %1054 = vmatpush1.msra.mxu0 0.0
    %1055 = vmatprep.mubr.f32.mxu0 0.0
    %1056 = vmatmul.mubr.f32.gmra.mrb[0].mxu0 %v989
    %v1057 = vpop.f32.mrb[0].mxu0
    %v1058 = vadd.f32 0.0, %v1057
    %v1059 = vpop.f32.mrb[0].mxu0
    %1060 = vdwg.mxu0
    %v1062 = vsel %vm662, %v821, 0
    %1064 = vmatprep.subr.mxu0 0.0
    %1065 = vmatpush1.msra.mxu0 %v824
    %1066 = vmatprep.subr.mxu0 0.0
    %1067 = vmatpush1.msra.mxu0 %v825
    %1068 = vmatprep.subr.mxu0 0.0
    %1069 = vmatpush1.msra.mxu0 0.0
    %1070 = vmatprep.subr.mxu0 0.0
    %1071 = vmatpush1.msra.mxu0 0.0
    %1072 = vmatprep.subr.mxu0 0.0
    %1073 = vmatpush1.msra.mxu0 0.0
    %1074 = vmatprep.subr.mxu0 0.0
    %1075 = vmatpush1.msra.mxu0 0.0
    %1076 = vmatprep.subr.mxu0 0.0
    %1077 = vmatpush1.msra.mxu0 0.0
    %1078 = vmatprep.subr.mxu0 0.0
    %1079 = vmatpush1.msra.mxu0 0.0
    %1080 = vmatprep.subr.mxu0 0.0
    %1081 = vmatpush1.msra.mxu0 0.0
    %1082 = vmatprep.subr.mxu0 0.0
    %1083 = vmatpush1.msra.mxu0 0.0
    %1084 = vmatprep.subr.mxu0 0.0
    %1085 = vmatpush1.msra.mxu0 0.0
    %1086 = vmatprep.subr.mxu0 0.0
    %1087 = vmatpush1.msra.mxu0 0.0
    %1088 = vmatprep.subr.mxu0 0.0
    %1089 = vmatpush1.msra.mxu0 0.0
    %1090 = vmatprep.subr.mxu0 0.0
    %1091 = vmatpush1.msra.mxu0 0.0
    %1092 = vmatprep.subr.mxu0 0.0
    %1093 = vmatpush1.msra.mxu0 0.0
    %1094 = vmatprep.subr.mxu0 0.0
    %1095 = vmatpush1.msra.mxu0 0.0
    %1096 = vmatprep.subr.mxu0 0.0
    %1097 = vmatpush1.msra.mxu0 0.0
    %1098 = vmatprep.subr.mxu0 0.0
    %1099 = vmatpush1.msra.mxu0 0.0
    %1100 = vmatprep.subr.mxu0 0.0
    %1101 = vmatpush1.msra.mxu0 0.0
    %1102 = vmatprep.subr.mxu0 0.0
    %1103 = vmatpush1.msra.mxu0 0.0
    %1104 = vmatprep.subr.mxu0 0.0
    %1105 = vmatpush1.msra.mxu0 0.0
    %1106 = vmatprep.subr.mxu0 0.0
    %1107 = vmatpush1.msra.mxu0 0.0
    %1108 = vmatprep.subr.mxu0 0.0
    %1109 = vmatpush1.msra.mxu0 0.0
    %1110 = vmatprep.subr.mxu0 0.0
    %1111 = vmatpush1.msra.mxu0 0.0
    %1112 = vmatprep.subr.mxu0 0.0
    %1113 = vmatpush1.msra.mxu0 0.0
    %1114 = vmatprep.subr.mxu0 0.0
    %1115 = vmatpush1.msra.mxu0 0.0
    %1116 = vmatprep.subr.mxu0 0.0
    %1117 = vmatpush1.msra.mxu0 0.0
    %1118 = vmatprep.subr.mxu0 0.0
    %1119 = vmatpush1.msra.mxu0 0.0
    %1120 = vmatprep.subr.mxu0 0.0
    %1121 = vmatpush1.msra.mxu0 0.0
    %1122 = vmatprep.subr.mxu0 0.0
    %1123 = vmatpush1.msra.mxu0 0.0
    %1124 = vmatprep.subr.mxu0 0.0
    %1125 = vmatpush1.msra.mxu0 0.0
    %1126 = vmatprep.subr.mxu0 0.0
    %1127 = vmatpush1.msra.mxu0 0.0
    %1128 = vmatprep.mubr.f32.mxu0 0.0
    %1129 = vmatmul.mubr.f32.gmra.mrb[0].mxu0 %v1062
    %v1130 = vpop.f32.mrb[0].mxu0
    %v1131 = vadd.f32 %v1058, %v1130
    %v1132 = vpop.f32.mrb[0].mxu0
    %1133 = vdwg.mxu0
    %1134 = vst.msk [vmem:[#allocation2] sm:$0xff] %vm154, %v1131
    %v1136 = vsel %vm662, %v233, 0
    %v1139 = vsel %vm662, %v318, 0
    %1141 = vmatprep.subr.mxu0 0.0
    %1142 = vmatpush1.xpose.msra.mxu0 %v1139
    %1143 = vmatprep.subr.mxu0 0.0
    %1144 = vmatpush1.xpose.msra.mxu0 0.0
    %1145 = vmatprep.subr.mxu0 0.0
    %1146 = vmatpush1.xpose.msra.mxu0 0.0
    %1147 = vmatprep.subr.mxu0 0.0
    %1148 = vmatpush1.xpose.msra.mxu0 0.0
    %1149 = vmatprep.subr.mxu0 0.0
    %1150 = vmatpush1.xpose.msra.mxu0 0.0
    %1151 = vmatprep.subr.mxu0 0.0
    %1152 = vmatpush1.xpose.msra.mxu0 0.0
    %1153 = vmatprep.subr.mxu0 0.0
    %1154 = vmatpush1.xpose.msra.mxu0 0.0
    %1155 = vmatprep.subr.mxu0 0.0
    %1156 = vmatpush1.xpose.msra.mxu0 0.0
    %1157 = vmatprep.subr.mxu0 0.0
    %1158 = vmatpush1.xpose.msra.mxu0 0.0
    %1159 = vmatprep.subr.mxu0 0.0
    %1160 = vmatpush1.xpose.msra.mxu0 0.0
    %1161 = vmatprep.subr.mxu0 0.0
    %1162 = vmatpush1.xpose.msra.mxu0 0.0
    %1163 = vmatprep.subr.mxu0 0.0
    %1164 = vmatpush1.xpose.msra.mxu0 0.0
    %1165 = vmatprep.subr.mxu0 0.0
    %1166 = vmatpush1.xpose.msra.mxu0 0.0
    %1167 = vmatprep.subr.mxu0 0.0
    %1168 = vmatpush1.xpose.msra.mxu0 0.0
    %1169 = vmatprep.subr.mxu0 0.0
    %1170 = vmatpush1.xpose.msra.mxu0 0.0
    %1171 = vmatprep.subr.mxu0 0.0
    %1172 = vmatpush1.xpose.msra.mxu0 0.0
    %1173 = vmatprep.subr.mxu0 0.0
    %1174 = vmatpush1.xpose.msra.mxu0 0.0
    %1175 = vmatprep.subr.mxu0 0.0
    %1176 = vmatpush1.xpose.msra.mxu0 0.0
    %1177 = vmatprep.subr.mxu0 0.0
    %1178 = vmatpush1.xpose.msra.mxu0 0.0
    %1179 = vmatprep.subr.mxu0 0.0
    %1180 = vmatpush1.xpose.msra.mxu0 0.0
    %1181 = vmatprep.subr.mxu0 0.0
    %1182 = vmatpush1.xpose.msra.mxu0 0.0
    %1183 = vmatprep.subr.mxu0 0.0
    %1184 = vmatpush1.xpose.msra.mxu0 0.0
    %1185 = vmatprep.subr.mxu0 0.0
    %1186 = vmatpush1.xpose.msra.mxu0 0.0
    %1187 = vmatprep.subr.mxu0 0.0
    %1188 = vmatpush1.xpose.msra.mxu0 0.0
    %1189 = vmatprep.subr.mxu0 0.0
    %1190 = vmatpush1.xpose.msra.mxu0 0.0
    %1191 = vmatprep.subr.mxu0 0.0
    %1192 = vmatpush1.xpose.msra.mxu0 0.0
    %1193 = vmatprep.subr.mxu0 0.0
    %1194 = vmatpush1.xpose.msra.mxu0 0.0
    %1195 = vmatprep.subr.mxu0 0.0
    %1196 = vmatpush1.xpose.msra.mxu0 0.0
    %1197 = vmatprep.subr.mxu0 0.0
    %1198 = vmatpush1.xpose.msra.mxu0 0.0
    %1199 = vmatprep.subr.mxu0 0.0
    %1200 = vmatpush1.xpose.msra.mxu0 0.0
    %1201 = vmatprep.subr.mxu0 0.0
    %1202 = vmatpush1.xpose.msra.mxu0 0.0
    %1203 = vmatprep.subr.mxu0 0.0
    %1204 = vmatpush1.xpose.msra.mxu0 0.0
    %1205 = vmatprep.mubr.f32.mxu0 0.0
    %1206 = vmatmul.mubr.f32.gmra.mrb[0].mxu0 %v1136
    %v1207 = vpop.f32.mrb[0].mxu0
    %v1208 = vadd.f32 %v661, %v1207
    %v1209 = vpop.f32.mrb[0].mxu0
    %1210 = vdwg.mxu0
    %v1211 = vsel %vm739, %v1208, -inf
    %1212 = vmax.xlane.f32.xlu0 %v1211
    %v1213 = vpop.xlane.xlu0 %1212
    %v1214 = vsub.f32 %v1208, %v1213
    %v1215 = vmul.f32 %v1214, 1.442695
    %v1216 = vpow.pop %v1215
    %v1217 = vsel %vm739, %v1216, 0.0
    %1218 = vadd.xlane.f32.xlu0 %v1217
    %v1219 = vpop.xlane.xlu0 %1218
    %v1220 = vrcp.pop %v1219
    %v1221 = vmul.f32 %v1216, %v1220
    %v1223 = vsel %vm739, %v1221, 0
    %1225 = vmatprep.subr.mxu0 0.0
    %1226 = vmatpush1.msra.mxu0 %v403
    %1227 = vmatprep.subr.mxu0 0.0
    %1228 = vmatpush1.msra.mxu0 0.0
    %1229 = vmatprep.subr.mxu0 0.0
    %1230 = vmatpush1.msra.mxu0 0.0
    %1231 = vmatprep.subr.mxu0 0.0
    %1232 = vmatpush1.msra.mxu0 0.0
    %1233 = vmatprep.subr.mxu0 0.0
    %1234 = vmatpush1.msra.mxu0 0.0
    %1235 = vmatprep.subr.mxu0 0.0
    %1236 = vmatpush1.msra.mxu0 0.0
    %1237 = vmatprep.subr.mxu0 0.0
    %1238 = vmatpush1.msra.mxu0 0.0
    %1239 = vmatprep.subr.mxu0 0.0
    %1240 = vmatpush1.msra.mxu0 0.0
    %1241 = vmatprep.subr.mxu0 0.0
    %1242 = vmatpush1.msra.mxu0 0.0
    %1243 = vmatprep.subr.mxu0 0.0
    %1244 = vmatpush1.msra.mxu0 0.0
    %1245 = vmatprep.subr.mxu0 0.0
    %1246 = vmatpush1.msra.mxu0 0.0
    %1247 = vmatprep.subr.mxu0 0.0
    %1248 = vmatpush1.msra.mxu0 0.0
    %1249 = vmatprep.subr.mxu0 0.0
    %1250 = vmatpush1.msra.mxu0 0.0
    %1251 = vmatprep.subr.mxu0 0.0
    %1252 = vmatpush1.msra.mxu0 0.0
    %1253 = vmatprep.subr.mxu0 0.0
    %1254 = vmatpush1.msra.mxu0 0.0
    %1255 = vmatprep.subr.mxu0 0.0
    %1256 = vmatpush1.msra.mxu0 0.0
    %1257 = vmatprep.subr.mxu0 0.0
    %1258 = vmatpush1.msra.mxu0 0.0
    %1259 = vmatprep.subr.mxu0 0.0
    %1260 = vmatpush1.msra.mxu0 0.0
    %1261 = vmatprep.subr.mxu0 0.0
    %1262 = vmatpush1.msra.mxu0 0.0
    %1263 = vmatprep.subr.mxu0 0.0
    %1264 = vmatpush1.msra.mxu0 0.0
    %1265 = vmatprep.subr.mxu0 0.0
    %1266 = vmatpush1.msra.mxu0 0.0
    %1267 = vmatprep.subr.mxu0 0.0
    %1268 = vmatpush1.msra.mxu0 0.0
    %1269 = vmatprep.subr.mxu0 0.0
    %1270 = vmatpush1.msra.mxu0 0.0
    %1271 = vmatprep.subr.mxu0 0.0
    %1272 = vmatpush1.msra.mxu0 0.0
    %1273 = vmatprep.subr.mxu0 0.0
    %1274 = vmatpush1.msra.mxu0 0.0
    %1275 = vmatprep.subr.mxu0 0.0
    %1276 = vmatpush1.msra.mxu0 0.0
    %1277 = vmatprep.subr.mxu0 0.0
    %1278 = vmatpush1.msra.mxu0 0.0
    %1279 = vmatprep.subr.mxu0 0.0
    %1280 = vmatpush1.msra.mxu0 0.0
    %1281 = vmatprep.subr.mxu0 0.0
    %1282 = vmatpush1.msra.mxu0 0.0
    %1283 = vmatprep.subr.mxu0 0.0
    %1284 = vmatpush1.msra.mxu0 0.0
    %1285 = vmatprep.subr.mxu0 0.0
    %1286 = vmatpush1.msra.mxu0 0.0
    %1287 = vmatprep.subr.mxu0 0.0
    %1288 = vmatpush1.msra.mxu0 0.0
    %1289 = vmatprep.mubr.f32.mxu0 0.0
    %1290 = vmatmul.mubr.f32.gmra.mrb[0].mxu0 %v1223
    %v1291 = vpop.f32.mrb[0].mxu0
    %v1292 = vadd.f32 0.0, %v1291
    %v1293 = vpop.f32.mrb[0].mxu0
    %1294 = vdwg.mxu0
    %v1295 = vld [vmem:[%s5] sm:$0xff]
    %v1296 = vld [vmem:[%s5 + $0x8] sm:$0xff]
    %v1298 = vsel %vm662, %v488, 0
    %v1301 = vsel %vm662, %v573, 0
    %1303 = vmatprep.subr.mxu0 0.0
    %1304 = vmatpush1.xpose.msra.mxu0 %v1301
    %1305 = vmatprep.subr.mxu0 0.0
    %1306 = vmatpush1.xpose.msra.mxu0 0.0
    %1307 = vmatprep.subr.mxu0 0.0
    %1308 = vmatpush1.xpose.msra.mxu0 0.0
    %1309 = vmatprep.subr.mxu0 0.0
    %1310 = vmatpush1.xpose.msra.mxu0 0.0
    %1311 = vmatprep.subr.mxu0 0.0
    %1312 = vmatpush1.xpose.msra.mxu0 0.0
    %1313 = vmatprep.subr.mxu0 0.0
    %1314 = vmatpush1.xpose.msra.mxu0 0.0
    %1315 = vmatprep.subr.mxu0 0.0
    %1316 = vmatpush1.xpose.msra.mxu0 0.0
    %1317 = vmatprep.subr.mxu0 0.0
    %1318 = vmatpush1.xpose.msra.mxu0 0.0
    %1319 = vmatprep.subr.mxu0 0.0
    %1320 = vmatpush1.xpose.msra.mxu0 0.0
    %1321 = vmatprep.subr.mxu0 0.0
    %1322 = vmatpush1.xpose.msra.mxu0 0.0
    %1323 = vmatprep.subr.mxu0 0.0
    %1324 = vmatpush1.xpose.msra.mxu0 0.0
    %1325 = vmatprep.subr.mxu0 0.0
    %1326 = vmatpush1.xpose.msra.mxu0 0.0
    %1327 = vmatprep.subr.mxu0 0.0
    %1328 = vmatpush1.xpose.msra.mxu0 0.0
    %1329 = vmatprep.subr.mxu0 0.0
    %1330 = vmatpush1.xpose.msra.mxu0 0.0
    %1331 = vmatprep.subr.mxu0 0.0
    %1332 = vmatpush1.xpose.msra.mxu0 0.0
    %1333 = vmatprep.subr.mxu0 0.0
    %1334 = vmatpush1.xpose.msra.mxu0 0.0
    %1335 = vmatprep.subr.mxu0 0.0
    %1336 = vmatpush1.xpose.msra.mxu0 0.0
    %1337 = vmatprep.subr.mxu0 0.0
    %1338 = vmatpush1.xpose.msra.mxu0 0.0
    %1339 = vmatprep.subr.mxu0 0.0
    %1340 = vmatpush1.xpose.msra.mxu0 0.0
    %1341 = vmatprep.subr.mxu0 0.0
    %1342 = vmatpush1.xpose.msra.mxu0 0.0
    %1343 = vmatprep.subr.mxu0 0.0
    %1344 = vmatpush1.xpose.msra.mxu0 0.0
    %1345 = vmatprep.subr.mxu0 0.0
    %1346 = vmatpush1.xpose.msra.mxu0 0.0
    %1347 = vmatprep.subr.mxu0 0.0
    %1348 = vmatpush1.xpose.msra.mxu0 0.0
    %1349 = vmatprep.subr.mxu0 0.0
    %1350 = vmatpush1.xpose.msra.mxu0 0.0
    %1351 = vmatprep.subr.mxu0 0.0
    %1352 = vmatpush1.xpose.msra.mxu0 0.0
    %1353 = vmatprep.subr.mxu0 0.0
    %1354 = vmatpush1.xpose.msra.mxu0 0.0
    %1355 = vmatprep.subr.mxu0 0.0
    %1356 = vmatpush1.xpose.msra.mxu0 0.0
    %1357 = vmatprep.subr.mxu0 0.0
    %1358 = vmatpush1.xpose.msra.mxu0 0.0
    %1359 = vmatprep.subr.mxu0 0.0
    %1360 = vmatpush1.xpose.msra.mxu0 0.0
    %1361 = vmatprep.subr.mxu0 0.0
    %1362 = vmatpush1.xpose.msra.mxu0 0.0
    %1363 = vmatprep.subr.mxu0 0.0
    %1364 = vmatpush1.xpose.msra.mxu0 0.0
    %1365 = vmatprep.subr.mxu0 0.0
    %1366 = vmatpush1.xpose.msra.mxu0 0.0
    %1367 = vmatprep.mubr.f32.mxu0 0.0
    %1368 = vmatmul.mubr.f32.gmra.mrb[0].mxu0 %v1298
    %v1369 = vpop.f32.mrb[0].mxu0
    %v1370 = vadd.f32 %v661, %v1369
    %v1371 = vpop.f32.mrb[0].mxu0
    %1372 = vdwg.mxu0
    %v1373 = vsel %vm739, %v1370, -inf
    %1374 = vmax.xlane.f32.xlu0 %v1373
    %v1375 = vpop.xlane.xlu0 %1374
    %v1376 = vsub.f32 %v1370, %v1375
    %v1377 = vmul.f32 %v1376, 1.442695
    %v1378 = vpow.pop %v1377
    %v1379 = vsel %vm739, %v1378, 0.0
    %1380 = vadd.xlane.f32.xlu0 %v1379
    %v1381 = vpop.xlane.xlu0 %1380
    %v1382 = vrcp.pop %v1381
    %v1383 = vmul.f32 %v1378, %v1382
    %v1385 = vsel %vm739, %v1383, 0
    %1387 = vmatprep.subr.mxu0 0.0
    %1388 = vmatpush1.msra.mxu0 %v658
    %1389 = vmatprep.subr.mxu0 0.0
    %1390 = vmatpush1.msra.mxu0 0.0
    %1391 = vmatprep.subr.mxu0 0.0
    %1392 = vmatpush1.msra.mxu0 0.0
    %1393 = vmatprep.subr.mxu0 0.0
    %1394 = vmatpush1.msra.mxu0 0.0
    %1395 = vmatprep.subr.mxu0 0.0
    %1396 = vmatpush1.msra.mxu0 0.0
    %1397 = vmatprep.subr.mxu0 0.0
    %1398 = vmatpush1.msra.mxu0 0.0
    %1399 = vmatprep.subr.mxu0 0.0
    %1400 = vmatpush1.msra.mxu0 0.0
    %1401 = vmatprep.subr.mxu0 0.0
    %1402 = vmatpush1.msra.mxu0 0.0
    %1403 = vmatprep.subr.mxu0 0.0
    %1404 = vmatpush1.msra.mxu0 0.0
    %1405 = vmatprep.subr.mxu0 0.0
    %1406 = vmatpush1.msra.mxu0 0.0
    %1407 = vmatprep.subr.mxu0 0.0
    %1408 = vmatpush1.msra.mxu0 0.0
    %1409 = vmatprep.subr.mxu0 0.0
    %1410 = vmatpush1.msra.mxu0 0.0
    %1411 = vmatprep.subr.mxu0 0.0
    %1412 = vmatpush1.msra.mxu0 0.0
    %1413 = vmatprep.subr.mxu0 0.0
    %1414 = vmatpush1.msra.mxu0 0.0
    %1415 = vmatprep.subr.mxu0 0.0
    %1416 = vmatpush1.msra.mxu0 0.0
    %1417 = vmatprep.subr.mxu0 0.0
    %1418 = vmatpush1.msra.mxu0 0.0
    %1419 = vmatprep.subr.mxu0 0.0
    %1420 = vmatpush1.msra.mxu0 0.0
    %1421 = vmatprep.subr.mxu0 0.0
    %1422 = vmatpush1.msra.mxu0 0.0
    %1423 = vmatprep.subr.mxu0 0.0
    %1424 = vmatpush1.msra.mxu0 0.0
    %1425 = vmatprep.subr.mxu0 0.0
    %1426 = vmatpush1.msra.mxu0 0.0
    %1427 = vmatprep.subr.mxu0 0.0
    %1428 = vmatpush1.msra.mxu0 0.0
    %1429 = vmatprep.subr.mxu0 0.0
    %1430 = vmatpush1.msra.mxu0 0.0
    %1431 = vmatprep.subr.mxu0 0.0
    %1432 = vmatpush1.msra.mxu0 0.0
    %1433 = vmatprep.subr.mxu0 0.0
    %1434 = vmatpush1.msra.mxu0 0.0
    %1435 = vmatprep.subr.mxu0 0.0
    %1436 = vmatpush1.msra.mxu0 0.0
    %1437 = vmatprep.subr.mxu0 0.0
    %1438 = vmatpush1.msra.mxu0 0.0
    %1439 = vmatprep.subr.mxu0 0.0
    %1440 = vmatpush1.msra.mxu0 0.0
    %1441 = vmatprep.subr.mxu0 0.0
    %1442 = vmatpush1.msra.mxu0 0.0
    %1443 = vmatprep.subr.mxu0 0.0
    %1444 = vmatpush1.msra.mxu0 0.0
    %1445 = vmatprep.subr.mxu0 0.0
    %1446 = vmatpush1.msra.mxu0 0.0
    %1447 = vmatprep.subr.mxu0 0.0
    %1448 = vmatpush1.msra.mxu0 0.0
    %1449 = vmatprep.subr.mxu0 0.0
    %1450 = vmatpush1.msra.mxu0 0.0
    %1451 = vmatprep.mubr.f32.mxu0 0.0
    %1452 = vmatmul.mubr.f32.gmra.mrb[0].mxu0 %v1385
    %v1453 = vpop.f32.mrb[0].mxu0
    %v1454 = vadd.f32 0.0, %v1453
    %v1455 = vpop.f32.mrb[0].mxu0
    %1456 = vdwg.mxu0
    %v1457 = vld [vmem:[%s5 + $0x10] sm:$0xff]
    %v1458 = vld [vmem:[%s5 + $0x18] sm:$0xff]
    %v1460 = vsel %vm662, %v1454, 0
    %1462 = vmatprep.subr.mxu0 0.0
    %1463 = vmatpush1.msra.mxu0 %v1457
    %1464 = vmatprep.subr.mxu0 0.0
    %1465 = vmatpush1.msra.mxu0 %v1458
    %1466 = vmatprep.subr.mxu0 0.0
    %1467 = vmatpush1.msra.mxu0 0.0
    %1468 = vmatprep.subr.mxu0 0.0
    %1469 = vmatpush1.msra.mxu0 0.0
    %1470 = vmatprep.subr.mxu0 0.0
    %1471 = vmatpush1.msra.mxu0 0.0
    %1472 = vmatprep.subr.mxu0 0.0
    %1473 = vmatpush1.msra.mxu0 0.0
    %1474 = vmatprep.subr.mxu0 0.0
    %1475 = vmatpush1.msra.mxu0 0.0
    %1476 = vmatprep.subr.mxu0 0.0
    %1477 = vmatpush1.msra.mxu0 0.0
    %1478 = vmatprep.subr.mxu0 0.0
    %1479 = vmatpush1.msra.mxu0 0.0
    %1480 = vmatprep.subr.mxu0 0.0
    %1481 = vmatpush1.msra.mxu0 0.0
    %1482 = vmatprep.subr.mxu0 0.0
    %1483 = vmatpush1.msra.mxu0 0.0
    %1484 = vmatprep.subr.mxu0 0.0
    %1485 = vmatpush1.msra.mxu0 0.0
    %1486 = vmatprep.subr.mxu0 0.0
    %1487 = vmatpush1.msra.mxu0 0.0
    %1488 = vmatprep.subr.mxu0 0.0
    %1489 = vmatpush1.msra.mxu0 0.0
    %1490 = vmatprep.subr.mxu0 0.0
    %1491 = vmatpush1.msra.mxu0 0.0
    %1492 = vmatprep.subr.mxu0 0.0
    %1493 = vmatpush1.msra.mxu0 0.0
    %1494 = vmatprep.subr.mxu0 0.0
    %1495 = vmatpush1.msra.mxu0 0.0
    %1496 = vmatprep.subr.mxu0 0.0
    %1497 = vmatpush1.msra.mxu0 0.0
    %1498 = vmatprep.subr.mxu0 0.0
    %1499 = vmatpush1.msra.mxu0 0.0
    %1500 = vmatprep.subr.mxu0 0.0
    %1501 = vmatpush1.msra.mxu0 0.0
    %1502 = vmatprep.subr.mxu0 0.0
    %1503 = vmatpush1.msra.mxu0 0.0
    %1504 = vmatprep.subr.mxu0 0.0
    %1505 = vmatpush1.msra.mxu0 0.0
    %1506 = vmatprep.subr.mxu0 0.0
    %1507 = vmatpush1.msra.mxu0 0.0
    %1508 = vmatprep.subr.mxu0 0.0
    %1509 = vmatpush1.msra.mxu0 0.0
    %1510 = vmatprep.subr.mxu0 0.0
    %1511 = vmatpush1.msra.mxu0 0.0
    %1512 = vmatprep.subr.mxu0 0.0
    %1513 = vmatpush1.msra.mxu0 0.0
    %1514 = vmatprep.subr.mxu0 0.0
    %1515 = vmatpush1.msra.mxu0 0.0
    %1516 = vmatprep.subr.mxu0 0.0
    %1517 = vmatpush1.msra.mxu0 0.0
    %1518 = vmatprep.subr.mxu0 0.0
    %1519 = vmatpush1.msra.mxu0 0.0
    %1520 = vmatprep.subr.mxu0 0.0
    %1521 = vmatpush1.msra.mxu0 0.0
    %1522 = vmatprep.subr.mxu0 0.0
    %1523 = vmatpush1.msra.mxu0 0.0
    %1524 = vmatprep.subr.mxu0 0.0
    %1525 = vmatpush1.msra.mxu0 0.0
    %1526 = vmatprep.mubr.f32.mxu0 0.0
    %1527 = vmatmul.mubr.f32.gmra.mrb[0].mxu0 %v1460
    %v1528 = vpop.f32.mrb[0].mxu0
    %v1529 = vadd.f32 0.0, %v1528
    %v1530 = vpop.f32.mrb[0].mxu0
    %1531 = vdwg.mxu0
    %v1533 = vsel %vm662, %v1292, 0
    %1535 = vmatprep.subr.mxu0 0.0
    %1536 = vmatpush1.msra.mxu0 %v1295
    %1537 = vmatprep.subr.mxu0 0.0
    %1538 = vmatpush1.msra.mxu0 %v1296
    %1539 = vmatprep.subr.mxu0 0.0
    %1540 = vmatpush1.msra.mxu0 0.0
    %1541 = vmatprep.subr.mxu0 0.0
    %1542 = vmatpush1.msra.mxu0 0.0
    %1543 = vmatprep.subr.mxu0 0.0
    %1544 = vmatpush1.msra.mxu0 0.0
    %1545 = vmatprep.subr.mxu0 0.0
    %1546 = vmatpush1.msra.mxu0 0.0
    %1547 = vmatprep.subr.mxu0 0.0
    %1548 = vmatpush1.msra.mxu0 0.0
    %1549 = vmatprep.subr.mxu0 0.0
    %1550 = vmatpush1.msra.mxu0 0.0
    %1551 = vmatprep.subr.mxu0 0.0
    %1552 = vmatpush1.msra.mxu0 0.0
    %1553 = vmatprep.subr.mxu0 0.0
    %1554 = vmatpush1.msra.mxu0 0.0
    %1555 = vmatprep.subr.mxu0 0.0
    %1556 = vmatpush1.msra.mxu0 0.0
    %1557 = vmatprep.subr.mxu0 0.0
    %1558 = vmatpush1.msra.mxu0 0.0
    %1559 = vmatprep.subr.mxu0 0.0
    %1560 = vmatpush1.msra.mxu0 0.0
    %1561 = vmatprep.subr.mxu0 0.0
    %1562 = vmatpush1.msra.mxu0 0.0
    %1563 = vmatprep.subr.mxu0 0.0
    %1564 = vmatpush1.msra.mxu0 0.0
    %1565 = vmatprep.subr.mxu0 0.0
    %1566 = vmatpush1.msra.mxu0 0.0
    %1567 = vmatprep.subr.mxu0 0.0
    %1568 = vmatpush1.msra.mxu0 0.0
    %1569 = vmatprep.subr.mxu0 0.0
    %1570 = vmatpush1.msra.mxu0 0.0
    %1571 = vmatprep.subr.mxu0 0.0
    %1572 = vmatpush1.msra.mxu0 0.0
    %1573 = vmatprep.subr.mxu0 0.0
    %1574 = vmatpush1.msra.mxu0 0.0
    %1575 = vmatprep.subr.mxu0 0.0
    %1576 = vmatpush1.msra.mxu0 0.0
    %1577 = vmatprep.subr.mxu0 0.0
    %1578 = vmatpush1.msra.mxu0 0.0
    %1579 = vmatprep.subr.mxu0 0.0
    %1580 = vmatpush1.msra.mxu0 0.0
    %1581 = vmatprep.subr.mxu0 0.0
    %1582 = vmatpush1.msra.mxu0 0.0
    %1583 = vmatprep.subr.mxu0 0.0
    %1584 = vmatpush1.msra.mxu0 0.0
    %1585 = vmatprep.subr.mxu0 0.0
    %1586 = vmatpush1.msra.mxu0 0.0
    %1587 = vmatprep.subr.mxu0 0.0
    %1588 = vmatpush1.msra.mxu0 0.0
    %1589 = vmatprep.subr.mxu0 0.0
    %1590 = vmatpush1.msra.mxu0 0.0
    %1591 = vmatprep.subr.mxu0 0.0
    %1592 = vmatpush1.msra.mxu0 0.0
    %1593 = vmatprep.subr.mxu0 0.0
    %1594 = vmatpush1.msra.mxu0 0.0
    %1595 = vmatprep.subr.mxu0 0.0
    %1596 = vmatpush1.msra.mxu0 0.0
    %1597 = vmatprep.subr.mxu0 0.0
    %1598 = vmatpush1.msra.mxu0 0.0
    %1599 = vmatprep.mubr.f32.mxu0 0.0
    %1600 = vmatmul.mubr.f32.gmra.mrb[0].mxu0 %v1533
    %v1601 = vpop.f32.mrb[0].mxu0
    %v1602 = vadd.f32 %v1529, %v1601
    %v1603 = vpop.f32.mrb[0].mxu0
    %1604 = vdwg.mxu0
    %1605 = vst.msk [vmem:[#allocation2 + $0x8] sm:$0xff] %vm154, %v1602
    %v1606 = vld [vmem:[#allocation2] sm:$0xff]
    %v1607 = vld [vmem:[#allocation2 + $0x8] sm:$0xff]
    %v1608 = vld [vmem:[%s9 + $0x6] sm:$0x1]
    %v1609 = vlaneseq
    %v1610 = vshrl.u32 %v1609, 7
    %v1611 = vsub.s32 0, %v1610
    %v1612 = vrot.slane %v1608, %v1611
    %v1613 = vadd.f32 %v1606, %v1612
    %v1614 = vadd.f32 %v1607, %v1612
    %v1615 = vadd.f32 %v137, %v1613
    %v1616 = vadd.f32 %v142, %v1614
    %v1617 = vsel %vm154, %v1615, 0.0
    %1618 = vadd.xlane.f32.xlu0 %v1617
    %v1619 = vpop.xlane.xlu0 %1618
    %v1620 = vsel %vm154, %v1616, 0.0
    %1621 = vadd.xlane.f32.xlu0 %v1620
    %v1622 = vpop.xlane.xlu0 %1621
    %v1623 = vrcp.pop 32.0
    %v1624 = vmul.f32 %v1619, %v1623
    %v1625 = vmul.f32 %v1622, %v1623
    %v1626 = vsub.f32 %v1615, %v1624
    %v1627 = vsub.f32 %v1616, %v1625
    %v1628 = vmul.f32 %v1626, %v1626
    %v1629 = vmul.f32 %v1627, %v1627
    %v1630 = vsel %vm154, %v1628, 0.0
    %1631 = vadd.xlane.f32.xlu0 %v1630
    %v1632 = vpop.xlane.xlu0 %1631
    %v1633 = vsel %vm154, %v1629, 0.0
    %1634 = vadd.xlane.f32.xlu0 %v1633
    %v1635 = vpop.xlane.xlu0 %1634
    %v1636 = vmul.f32 %v1632, %v1623
    %v1637 = vmul.f32 %v1635, %v1623
    %v1638 = vadd.f32 %v1636, 1e-05
    %v1639 = vadd.f32 %v1637, 1e-05
    %v1640 = vrsqrt.pop %v1638
    %v1641 = vrsqrt.pop %v1639
    %v1642 = vmul.f32 %v1626, %v1640
    %v1643 = vmul.f32 %v1627, %v1641
    %v1644 = vld [vmem:[%s9 + $0x7] sm:$0x1]
    %v1645 = vlaneseq
    %v1646 = vshrl.u32 %v1645, 7
    %v1647 = vsub.s32 0, %v1646
    %v1648 = vrot.slane %v1644, %v1647
    %v1649 = vmul.f32 %v1642, %v1648
    %v1650 = vmul.f32 %v1643, %v1648
    %v1651 = vld [vmem:[%s9 + $0x8] sm:$0x1]
    %v1652 = vlaneseq
    %v1653 = vshrl.u32 %v1652, 7
    %v1654 = vsub.s32 0, %v1653
    %v1655 = vrot.slane %v1651, %v1654
    %v1656 = vadd.f32 %v1649, %v1655
    %v1657 = vadd.f32 %v1650, %v1655
    %v1658 = vld [vmem:[%s6] sm:$0xff]
    %v1659 = vld [vmem:[%s6 + $0x8] sm:$0xff]
    %v1660 = vld [vmem:[%s6 + $0x10] sm:$0xff]
    %v1661 = vld [vmem:[%s6 + $0x18] sm:$0xff]
    %v1662 = vld [vmem:[%s9 + $0x9] sm:$0x1]
    %v1663 = vlaneseq
    %v1664 = vshrl.u32 %v1663, 7
    %v1665 = vsub.s32 0, %v1664
    %v1666 = vrot.slane %v1662, %v1665
    %v1668 = vsel %vm154, %v1656, 0
    %v1671 = vsel %vm154, %v1657, 0
    %1673 = vmatprep.subr.mxu0 0.0
    %1674 = vmatpush1.msra.mxu0 %v1658
    %1675 = vmatprep.subr.mxu0 0.0
    %1676 = vmatpush1.msra.mxu0 %v1659
    %1677 = vmatprep.subr.mxu0 0.0
    %1678 = vmatpush1.msra.mxu0 %v1660
    %1679 = vmatprep.subr.mxu0 0.0
    %1680 = vmatpush1.msra.mxu0 %v1661
    %1681 = vmatprep.subr.mxu0 0.0
    %1682 = vmatpush1.msra.mxu0 0.0
    %1683 = vmatprep.subr.mxu0 0.0
    %1684 = vmatpush1.msra.mxu0 0.0
    %1685 = vmatprep.subr.mxu0 0.0
    %1686 = vmatpush1.msra.mxu0 0.0
    %1687 = vmatprep.subr.mxu0 0.0
    %1688 = vmatpush1.msra.mxu0 0.0
    %1689 = vmatprep.subr.mxu0 0.0
    %1690 = vmatpush1.msra.mxu0 0.0
    %1691 = vmatprep.subr.mxu0 0.0
    %1692 = vmatpush1.msra.mxu0 0.0
    %1693 = vmatprep.subr.mxu0 0.0
    %1694 = vmatpush1.msra.mxu0 0.0
    %1695 = vmatprep.subr.mxu0 0.0
    %1696 = vmatpush1.msra.mxu0 0.0
    %1697 = vmatprep.subr.mxu0 0.0
    %1698 = vmatpush1.msra.mxu0 0.0
    %1699 = vmatprep.subr.mxu0 0.0
    %1700 = vmatpush1.msra.mxu0 0.0
    %1701 = vmatprep.subr.mxu0 0.0
    %1702 = vmatpush1.msra.mxu0 0.0
    %1703 = vmatprep.subr.mxu0 0.0
    %1704 = vmatpush1.msra.mxu0 0.0
    %1705 = vmatprep.subr.mxu0 0.0
    %1706 = vmatpush1.msra.mxu0 0.0
    %1707 = vmatprep.subr.mxu0 0.0
    %1708 = vmatpush1.msra.mxu0 0.0
    %1709 = vmatprep.subr.mxu0 0.0
    %1710 = vmatpush1.msra.mxu0 0.0
    %1711 = vmatprep.subr.mxu0 0.0
    %1712 = vmatpush1.msra.mxu0 0.0
    %1713 = vmatprep.subr.mxu0 0.0
    %1714 = vmatpush1.msra.mxu0 0.0
    %1715 = vmatprep.subr.mxu0 0.0
    %1716 = vmatpush1.msra.mxu0 0.0
    %1717 = vmatprep.subr.mxu0 0.0
    %1718 = vmatpush1.msra.mxu0 0.0
    %1719 = vmatprep.subr.mxu0 0.0
    %1720 = vmatpush1.msra.mxu0 0.0
    %1721 = vmatprep.subr.mxu0 0.0
    %1722 = vmatpush1.msra.mxu0 0.0
    %1723 = vmatprep.subr.mxu0 0.0
    %1724 = vmatpush1.msra.mxu0 0.0
    %1725 = vmatprep.subr.mxu0 0.0
    %1726 = vmatpush1.msra.mxu0 0.0
    %1727 = vmatprep.subr.mxu0 0.0
    %1728 = vmatpush1.msra.mxu0 0.0
    %1729 = vmatprep.subr.mxu0 0.0
    %1730 = vmatpush1.msra.mxu0 0.0
    %1731 = vmatprep.subr.mxu0 0.0
    %1732 = vmatpush1.msra.mxu0 0.0
    %1733 = vmatprep.subr.mxu0 0.0
    %1734 = vmatpush1.msra.mxu0 0.0
    %1735 = vmatprep.subr.mxu0 0.0
    %1736 = vmatpush1.msra.mxu0 0.0
    %1737 = vmatprep.mubr.f32.mxu0 0.0
    %1738 = vmatmul.mubr.f32.gmra.mrb[0].mxu0 %v1668
    %v1739 = vpop.f32.mrb[0].mxu0
    %v1740 = vadd.f32 %v1666, %v1739
    %v1741 = vpop.f32.mrb[0].mxu0
    %1742 = vmatprep.mubr.f32.mxu0 0.0
    %1743 = vmatmul.mubr.f32.gmra.mrb[0].mxu0 %v1671
    %v1744 = vpop.f32.mrb[0].mxu0
    %v1745 = vadd.f32 %v1666, %v1744
    %v1746 = vpop.f32.mrb[0].mxu0
    %1747 = vdwg.mxu0
    %v1748 = vmax.f32 %v1740, 0.0
    %v1749 = vmax.f32 %v1745, 0.0
    %v1750 = vld [vmem:[%s7] sm:$0xff]
    %v1751 = vld [vmem:[%s7 + $0x8] sm:$0xff]
    %v1752 = vld [vmem:[%s7 + $0x10] sm:$0xff]
    %v1753 = vld [vmem:[%s7 + $0x18] sm:$0xff]
    %v1754 = vld [vmem:[%s7 + $0x20] sm:$0xff]
    %v1755 = vld [vmem:[%s7 + $0x28] sm:$0xff]
    %v1756 = vld [vmem:[%s7 + $0x30] sm:$0xff]
    %v1757 = vld [vmem:[%s7 + $0x38] sm:$0xff]
    %v1758 = vld [vmem:[%s7 + $0x40] sm:$0xff]
    %v1759 = vld [vmem:[%s7 + $0x48] sm:$0xff]
    %v1760 = vld [vmem:[%s7 + $0x50] sm:$0xff]
    %v1761 = vld [vmem:[%s7 + $0x58] sm:$0xff]
    %v1762 = vld [vmem:[%s7 + $0x60] sm:$0xff]
    %v1763 = vld [vmem:[%s7 + $0x68] sm:$0xff]
    %v1764 = vld [vmem:[%s7 + $0x70] sm:$0xff]
    %v1765 = vld [vmem:[%s7 + $0x78] sm:$0xff]
    %v1766 = vld [vmem:[%s9 + $0xa] sm:$0x1]
    %v1767 = vlaneseq
    %v1768 = vshrl.u32 %v1767, 7
    %v1769 = vsub.s32 0, %v1768
    %v1770 = vrot.slane %v1766, %v1769
    %1771 = vmatprep.subr.mxu0 0.0
    %1772 = vmatpush1.msra.mxu0 %v1750
    %1773 = vmatprep.subr.mxu0 0.0
    %1774 = vmatpush1.msra.mxu0 %v1751
    %1775 = vmatprep.subr.mxu0 0.0
    %1776 = vmatpush1.msra.mxu0 %v1752
    %1777 = vmatprep.subr.mxu0 0.0
    %1778 = vmatpush1.msra.mxu0 %v1753
    %1779 = vmatprep.subr.mxu0 0.0
    %1780 = vmatpush1.msra.mxu0 %v1754
    %1781 = vmatprep.subr.mxu0 0.0
    %1782 = vmatpush1.msra.mxu0 %v1755
    %1783 = vmatprep.subr.mxu0 0.0
    %1784 = vmatpush1.msra.mxu0 %v1756
    %1785 = vmatprep.subr.mxu0 0.0
    %1786 = vmatpush1.msra.mxu0 %v1757
    %1787 = vmatprep.subr.mxu0 0.0
    %1788 = vmatpush1.msra.mxu0 %v1758
    %1789 = vmatprep.subr.mxu0 0.0
    %1790 = vmatpush1.msra.mxu0 %v1759
    %1791 = vmatprep.subr.mxu0 0.0
    %1792 = vmatpush1.msra.mxu0 %v1760
    %1793 = vmatprep.subr.mxu0 0.0
    %1794 = vmatpush1.msra.mxu0 %v1761
    %1795 = vmatprep.subr.mxu0 0.0
    %1796 = vmatpush1.msra.mxu0 %v1762
    %1797 = vmatprep.subr.mxu0 0.0
    %1798 = vmatpush1.msra.mxu0 %v1763
    %1799 = vmatprep.subr.mxu0 0.0
    %1800 = vmatpush1.msra.mxu0 %v1764
    %1801 = vmatprep.subr.mxu0 0.0
    %1802 = vmatpush1.msra.mxu0 %v1765
    %1803 = vmatprep.subr.mxu0 0.0
    %1804 = vmatpush1.msra.mxu0 0.0
    %1805 = vmatprep.subr.mxu0 0.0
    %1806 = vmatpush1.msra.mxu0 0.0
    %1807 = vmatprep.subr.mxu0 0.0
    %1808 = vmatpush1.msra.mxu0 0.0
    %1809 = vmatprep.subr.mxu0 0.0
    %1810 = vmatpush1.msra.mxu0 0.0
    %1811 = vmatprep.subr.mxu0 0.0
    %1812 = vmatpush1.msra.mxu0 0.0
    %1813 = vmatprep.subr.mxu0 0.0
    %1814 = vmatpush1.msra.mxu0 0.0
    %1815 = vmatprep.subr.mxu0 0.0
    %1816 = vmatpush1.msra.mxu0 0.0
    %1817 = vmatprep.subr.mxu0 0.0
    %1818 = vmatpush1.msra.mxu0 0.0
    %1819 = vmatprep.subr.mxu0 0.0
    %1820 = vmatpush1.msra.mxu0 0.0
    %1821 = vmatprep.subr.mxu0 0.0
    %1822 = vmatpush1.msra.mxu0 0.0
    %1823 = vmatprep.subr.mxu0 0.0
    %1824 = vmatpush1.msra.mxu0 0.0
    %1825 = vmatprep.subr.mxu0 0.0
    %1826 = vmatpush1.msra.mxu0 0.0
    %1827 = vmatprep.subr.mxu0 0.0
    %1828 = vmatpush1.msra.mxu0 0.0
    %1829 = vmatprep.subr.mxu0 0.0
    %1830 = vmatpush1.msra.mxu0 0.0
    %1831 = vmatprep.subr.mxu0 0.0
    %1832 = vmatpush1.msra.mxu0 0.0
    %1833 = vmatprep.subr.mxu0 0.0
    %1834 = vmatpush1.msra.mxu0 0.0
    %1835 = vmatprep.mubr.f32.mxu0 0.0
    %1836 = vmatmul.mubr.f32.gmra.mrb[0].mxu0 %v1748
    %v1837 = vpop.f32.mrb[0].mxu0
    %v1838 = vadd.f32 %v1770, %v1837
    %v1839 = vpop.f32.mrb[0].mxu0
    %1840 = vmatprep.mubr.f32.mxu0 0.0
    %1841 = vmatmul.mubr.f32.gmra.mrb[0].mxu0 %v1749
    %v1842 = vpop.f32.mrb[0].mxu0
    %v1843 = vadd.f32 %v1770, %v1842
    %v1844 = vpop.f32.mrb[0].mxu0
    %1845 = vdwg.mxu0
    %v1846 = vadd.f32 %v1656, %v1838
    %v1847 = vadd.f32 %v1657, %v1843
    %v1848 = vsel %vm154, %v1846, 0.0
    %1849 = vadd.xlane.f32.xlu0 %v1848
    %v1850 = vpop.xlane.xlu0 %1849
    %v1851 = vsel %vm154, %v1847, 0.0
    %1852 = vadd.xlane.f32.xlu0 %v1851
    %v1853 = vpop.xlane.xlu0 %1852
    %v1854 = vmul.f32 %v1850, %v1623
    %v1855 = vmul.f32 %v1853, %v1623
    %v1856 = vsub.f32 %v1846, %v1854
    %v1857 = vsub.f32 %v1847, %v1855
    %v1858 = vmul.f32 %v1856, %v1856
    %v1859 = vmul.f32 %v1857, %v1857
    %v1860 = vsel %vm154, %v1858, 0.0
    %1861 = vadd.xlane.f32.xlu0 %v1860
    %v1862 = vpop.xlane.xlu0 %1861
    %v1863 = vsel %vm154, %v1859, 0.0
    %1864 = vadd.xlane.f32.xlu0 %v1863
    %v1865 = vpop.xlane.xlu0 %1864
    %v1866 = vmul.f32 %v1862, %v1623
    %v1867 = vmul.f32 %v1865, %v1623
    %v1868 = vadd.f32 %v1866, 1e-05
    %v1869 = vadd.f32 %v1867, 1e-05
    %v1870 = vrsqrt.pop %v1868
    %v1871 = vrsqrt.pop %v1869
    %v1872 = vmul.f32 %v1856, %v1870
    %v1873 = vmul.f32 %v1857, %v1871
    %v1874 = vld [vmem:[%s9 + $0xb] sm:$0x1]
    %v1875 = vlaneseq
    %v1876 = vshrl.u32 %v1875, 7
    %v1877 = vsub.s32 0, %v1876
    %v1878 = vrot.slane %v1874, %v1877
    %v1879 = vmul.f32 %v1872, %v1878
    %v1880 = vmul.f32 %v1873, %v1878
    %v1881 = vld [vmem:[%s9 + $0xc] sm:$0x1]
    %v1882 = vlaneseq
    %v1883 = vshrl.u32 %v1882, 7
    %v1884 = vsub.s32 0, %v1883
    %v1885 = vrot.slane %v1881, %v1884
    %v1886 = vadd.f32 %v1879, %v1885
    %v1887 = vadd.f32 %v1880, %v1885
    %v1888 = vld [vmem:[%s8] sm:$0xff]
    %v1889 = vld [vmem:[%s8 + $0x8] sm:$0xff]
    %v1890 = vld [vmem:[%s8 + $0x10] sm:$0xff]
    %v1891 = vld [vmem:[%s8 + $0x18] sm:$0xff]
    %v1892 = vld [vmem:[%s9 + $0xd] sm:$0x1]
    %v1893 = vlaneseq
    %v1894 = vshrl.u32 %v1893, 7
    %v1895 = vsub.s32 0, %v1894
    %v1896 = vrot.slane %v1892, %v1895
    %v1898 = vsel %vm154, %v1886, 0
    %v1901 = vsel %vm154, %v1887, 0
    %1903 = vmatprep.subr.mxu0 0.0
    %1904 = vmatpush1.msra.mxu0 %v1888
    %1905 = vmatprep.subr.mxu0 0.0
    %1906 = vmatpush1.msra.mxu0 %v1889
    %1907 = vmatprep.subr.mxu0 0.0
    %1908 = vmatpush1.msra.mxu0 %v1890
    %1909 = vmatprep.subr.mxu0 0.0
    %1910 = vmatpush1.msra.mxu0 %v1891
    %1911 = vmatprep.subr.mxu0 0.0
    %1912 = vmatpush1.msra.mxu0 0.0
    %1913 = vmatprep.subr.mxu0 0.0
    %1914 = vmatpush1.msra.mxu0 0.0
    %1915 = vmatprep.subr.mxu0 0.0
    %1916 = vmatpush1.msra.mxu0 0.0
    %1917 = vmatprep.subr.mxu0 0.0
    %1918 = vmatpush1.msra.mxu0 0.0
    %1919 = vmatprep.subr.mxu0 0.0
    %1920 = vmatpush1.msra.mxu0 0.0
    %1921 = vmatprep.subr.mxu0 0.0
    %1922 = vmatpush1.msra.mxu0 0.0
    %1923 = vmatprep.subr.mxu0 0.0
    %1924 = vmatpush1.msra.mxu0 0.0
    %1925 = vmatprep.subr.mxu0 0.0
    %1926 = vmatpush1.msra.mxu0 0.0
    %1927 = vmatprep.subr.mxu0 0.0
    %1928 = vmatpush1.msra.mxu0 0.0
    %1929 = vmatprep.subr.mxu0 0.0
    %1930 = vmatpush1.msra.mxu0 0.0
    %1931 = vmatprep.subr.mxu0 0.0
    %1932 = vmatpush1.msra.mxu0 0.0
    %1933 = vmatprep.subr.mxu0 0.0
    %1934 = vmatpush1.msra.mxu0 0.0
    %1935 = vmatprep.subr.mxu0 0.0
    %1936 = vmatpush1.msra.mxu0 0.0
    %1937 = vmatprep.subr.mxu0 0.0
    %1938 = vmatpush1.msra.mxu0 0.0
    %1939 = vmatprep.subr.mxu0 0.0
    %1940 = vmatpush1.msra.mxu0 0.0
    %1941 = vmatprep.subr.mxu0 0.0
    %1942 = vmatpush1.msra.mxu0 0.0
    %1943 = vmatprep.subr.mxu0 0.0
    %1944 = vmatpush1.msra.mxu0 0.0
    %1945 = vmatprep.subr.mxu0 0.0
    %1946 = vmatpush1.msra.mxu0 0.0
    %1947 = vmatprep.subr.mxu0 0.0
    %1948 = vmatpush1.msra.mxu0 0.0
    %1949 = vmatprep.subr.mxu0 0.0
    %1950 = vmatpush1.msra.mxu0 0.0
    %1951 = vmatprep.subr.mxu0 0.0
    %1952 = vmatpush1.msra.mxu0 0.0
    %1953 = vmatprep.subr.mxu0 0.0
    %1954 = vmatpush1.msra.mxu0 0.0
    %1955 = vmatprep.subr.mxu0 0.0
    %1956 = vmatpush1.msra.mxu0 0.0
    %1957 = vmatprep.subr.mxu0 0.0
    %1958 = vmatpush1.msra.mxu0 0.0
    %1959 = vmatprep.subr.mxu0 0.0
    %1960 = vmatpush1.msra.mxu0 0.0
    %1961 = vmatprep.subr.mxu0 0.0
    %1962 = vmatpush1.msra.mxu0 0.0
    %1963 = vmatprep.subr.mxu0 0.0
    %1964 = vmatpush1.msra.mxu0 0.0
    %1965 = vmatprep.subr.mxu0 0.0
    %1966 = vmatpush1.msra.mxu0 0.0
    %1967 = vmatprep.mubr.f32.mxu0 0.0
    %1968 = vmatmul.mubr.f32.gmra.mrb[0].mxu0 %v1898
    %v1969 = vpop.f32.mrb[0].mxu0
    %v1970 = vadd.f32 %v1896, %v1969
    %v1971 = vpop.f32.mrb[0].mxu0
    %1972 = vmatprep.mubr.f32.mxu0 0.0
    %1973 = vmatmul.mubr.f32.gmra.mrb[0].mxu0 %v1901
    %v1974 = vpop.f32.mrb[0].mxu0
    %v1975 = vadd.f32 %v1896, %v1974
    %v1976 = vpop.f32.mrb[0].mxu0
    %1977 = vdwg.mxu0
    %1978 = vst [vmem:[#allocation3] sm:$0xff] %v1970
    %1979 = vst [vmem:[#allocation3 + $0x8] sm:$0xff] %v1975
    // Predicated region
    $region42: #{simple_lm_logits_padded.1} parent=1 // pred_check
      _
    $region43: #{simple_lm_logits_padded.1} parent=1 // pred_check_branch
      %1981 = sbr.rel (0) target = $region45
    $region44: #{simple_lm_logits_padded.1} parent=1 // pred_region
      %s1983 = ssub.s32 256, 256
      %1984 = vsyncadd [#allocation4], %s1983
      %s1985 = sshll.u32 [#allocation3], 4
      %s1986 = int_to_ptr.vmem [resolvable:$true] %s1985
      %1991 = dma.vmem_to_hbm [thread:$0]  %s1986, 256, %s10, [#allocation4], 128, 128, 8
    $region45: #{simple_lm_logits_padded.1} parent=1 // pred_fallthru
      _
    // Predicated region
    $region46: #{simple_lm_logits_padded.1} parent=1 // pred_check
      _
    $region47: #{simple_lm_logits_padded.1} parent=1 // pred_check_branch
      %1993 = sbr.rel (0) target = $region49
    $region48: #{simple_lm_logits_padded.1} parent=1 // pred_region
      %1994 = dma.done [#allocation4], 256
    $region49: #{simple_lm_logits_padded.1} parent=1 // pred_fallthru
      _
    %1995 = vsyncpa [#allocation4], 1

</llo_original>
